<compile_context>
chip_gen: v7x
topology: tpu7x:2x2x1
jax: 0.10.0
libtpu: 0.0.40
codegen_flags: <defaults>
</compile_context>

<pallas_src>
import functools

import jax
import jax.numpy as jnp
from jax.experimental import pallas as pl
from jax.experimental.pallas import tpu as pltpu


def _round_up(v, m):
    return ((v + m - 1) // m) * m


def _gcn_kernel(adj_ref, x_ref, w_ref, b2_ref, wout_ref, bout_ref, o_ref, *,
                layers, use_bf16, vpu_aggregate):
    bblk, n, _ = adj_ref.shape
    dp = x_ref.shape[2]
    m = bblk * n
    cdt = jnp.bfloat16 if use_bf16 else jnp.float32

    # Adjacency may be shipped as bf16 (exact for 0/1 graphs).  Cast once, hoisted
    # out of the layer loop (Mosaic does not reliably CSE repeated packs/casts).
    adj_in = adj_ref[...]                                       # (bblk, N, N)
    adj_f32 = adj_in.astype(jnp.float32)
    adj_mxu = adj_f32 if cdt == jnp.float32 else adj_in.astype(cdt)

    x0 = x_ref[...]                                             # (bblk, N, Dp), f32

    # denom = adj.sum(2) + 1 (f32 accumulate); exact reciprocal hoisted out of the
    # layer loop -> per-layer normalization is a single VPU multiply.
    denom = jnp.sum(adj_f32, axis=2, keepdims=True) + 1.0       # (bblk, N, 1)
    inv_denom = pl.reciprocal(denom, approx=False).reshape(m, 1)

    def aggregate(out):
        # (adj + I) @ out  ==  adj @ out + out   (no adj+I temp materialized).
        if vpu_aggregate:
            # Small-N path: broadcast-multiply-accumulate over the neighbour dim on
            # the VPU/XLU; keeps the MXU free for the dense weight matmul.
            prod = adj_f32[:, :, :, None] * out[:, None, :, :]  # (bblk, N, N, Dp)
            ax = jnp.sum(prod, axis=2)
        else:
            ax = jnp.einsum("bnm,bmd->bnd", adj_mxu, out.astype(cdt),
                            preferred_element_type=jnp.float32)
        return ax + out

    def layer_step(w, b2, out):
        ax = aggregate(out)                                     # (bblk, N, Dp) f32
        # One big MXU matmul per layer on the flattened (bblk*N, Dp) slab.
        axw = jnp.dot(ax.reshape(m, dp).astype(cdt), w.astype(cdt),
                      preferred_element_type=jnp.float32) + b2
        return jnp.maximum(axw * inv_denom, 0.0).reshape(bblk, n, dp)

    if layers <= 4:                                             # static unroll
        out = x0
        for l in range(layers):
            out = layer_step(w_ref[l], b2_ref[l], out)
    else:                                                       # bound live ranges
        out = jax.lax.fori_loop(
            0, layers, lambda l, o: layer_step(w_ref[l], b2_ref[l], o), x0)

    final = jnp.dot((out.reshape(m, dp) + x0.reshape(m, dp)).astype(cdt),
                    wout_ref[...].astype(cdt),
                    preferred_element_type=jnp.float32) + bout_ref[...]
    o_ref[...] = final.reshape(o_ref.shape).astype(o_ref.dtype)


def origin_graph_conv_layer(adj, x, w_stack, b_stack, w_out, b_out, *,
                            layers, batch_block=None, use_bf16_matmul=False,
                            ship_adj_bf16=True, return_padded=False):
    """GCN forward.  Weights are in "x @ W" convention (transposed vs torch)."""
    B, N, D = x.shape
    O = w_out.shape[1]
    LANE = 128
    SUB = 16 if (use_bf16_matmul or ship_adj_bf16) else 8

    Np = _round_up(N, SUB)
    Dp = _round_up(D, LANE)
    Op = _round_up(O, LANE)

    # Zero padding: padded feature lanes stay zero through the layers (padded
    # weight rows/cols and biases are zero); padded graph rows never influence the
    # real rows because their adjacency columns are zero.
    adj_p = jnp.pad(adj, ((0, 0), (0, Np - N), (0, Np - N)))
    if ship_adj_bf16:
        # 0/1 dependency-graph adjacency is exact in bf16; halves adj DMA bytes.
        adj_p = adj_p.astype(jnp.bfloat16)
    x_p = jnp.pad(x, ((0, 0), (0, Np - N), (0, Dp - D)))
    w_p = jnp.pad(w_stack, ((0, 0), (0, Dp - D), (0, Dp - D)))
    b2_p = jnp.pad(2.0 * b_stack, ((0, 0), (0, 0), (0, Dp - D)))  # bias added twice
    wo_p = jnp.pad(w_out, ((0, Dp - D), (0, Op - O)))
    bo_p = jnp.pad(b_out, ((0, 0), (0, Op - O)))

    # Small graphs: aggregate on the VPU (bblk tiny (N,N)x(N,Dp) matmuls would
    # fill <1% of a 128/256-wide MXU and be dominated by push/pop overhead).
    vpu_aggregate = Np <= 64
    adj_isize = adj_p.dtype.itemsize

    def step_bytes(bblk):
        # Double-buffered per-step input/output slabs.
        slabs = 2 * bblk * Np * (Np * adj_isize + (Dp + Op) * 4)
        # Live in-kernel f32 temps: adj f32 copy, x0, out, ax/axw (+ VPU product).
        temps = bblk * Np * Np * 4 + 4 * bblk * Np * Dp * 4
        if vpu_aggregate:
            temps += bblk * Np * Np * Dp * 4
        return slabs + temps

    param_bytes = 4 * (layers * Dp * Dp + layers * Dp + Dp * Op + Op)
    VMEM_BUDGET = 40 << 20                      # conservative for v7x (64 MiB/TC)

    if batch_block is None:
        # Keep >= 4 grid steps when possible (>= 2 per TensorCore on dual-core
        # chips so DMA/compute pipelining has something to overlap), then cap the
        # slab by the VMEM budget.
        bblk = max(1, B // 4)
        while bblk > 1 and (B % bblk != 0
                            or step_bytes(bblk) + 2 * param_bytes > VMEM_BUDGET):
            bblk -= 1
    else:
        bblk = max(1, min(int(batch_block), B))
        while B % bblk != 0:
            bblk -= 1

    grid = (B // bblk,)
    # Scoped VMEM limit: above v5e's 16 MiB default, below v7x's 64 MiB physical.
    vmem_limit = int(min(56 << 20,
                         max(32 << 20, 2 * (step_bytes(bblk) + 2 * param_bytes))))

    kernel = functools.partial(_gcn_kernel, layers=layers,
                               use_bf16=use_bf16_matmul,
                               vpu_aggregate=vpu_aggregate)

    flops = 2 * B * layers * (Np * Np * Dp + Np * Dp * Dp) + 2 * B * Np * Dp * Op
    bytes_accessed = (adj_p.size * adj_isize
                      + 4 * (x_p.size + w_p.size + b2_p.size + wo_p.size
                             + bo_p.size + B * Np * Op))

    def build_and_run(single_buffer_params):
        def param_spec(shape):
            idx = lambda b: (0,) * len(shape)
            if single_buffer_params:
                # Grid-invariant block -> double-buffering it only wastes VMEM.
                return pl.BlockSpec(shape, idx, pipeline_mode=pl.Buffered(1))
            return pl.BlockSpec(shape, idx)

        return pl.pallas_call(
            kernel,
            out_shape=jax.ShapeDtypeStruct((B, Np, Op), jnp.float32),
            grid_spec=pltpu.PrefetchScalarGridSpec(
                num_scalar_prefetch=0,
                grid=grid,
                in_specs=[
                    pl.BlockSpec((bblk, Np, Np), lambda b: (b, 0, 0)),   # adjacency
                    pl.BlockSpec((bblk, Np, Dp), lambda b: (b, 0, 0)),   # features
                    param_spec((layers, Dp, Dp)),                        # GCN weights
                    param_spec((layers, 1, Dp)),                         # 2 * biases
                    param_spec((Dp, Op)),                                # out projection
                    param_spec((1, Op)),                                 # out bias
                ],
                out_specs=pl.BlockSpec((bblk, Np, Op), lambda b: (b, 0, 0)),
            ),
            compiler_params=pltpu.CompilerParams(
                dimension_semantics=("parallel",),
                vmem_limit_bytes=vmem_limit),
            cost_estimate=pl.CostEstimate(flops=flops, transcendentals=0,
                                          bytes_accessed=bytes_accessed),
        )(adj_p, x_p, w_p, b2_p, wo_p, bo_p)

    try:
        out_p = build_and_run(single_buffer_params=True)
    except Exception:
        # Fallback for jax builds that reject single-buffered pipeline_mode on
        # pallas_call operands; numerics are identical, only VMEM use differs.
        out_p = build_and_run(single_buffer_params=False)

    if return_padded or (Np == N and Op == O):
        return out_p
    return out_p[:, :N, :O]


def _reference(adj, x, w_stack, b_stack, w_out, b_out, layers):
    # Pure-JAX replica of the PyTorch forward (eval mode).
    denom = jnp.sum(adj, axis=2, keepdims=True) + 1.0
    outputs = x
    for l in range(layers):
        ax = jnp.einsum("bnm,bmd->bnd", adj, outputs)
        axw = jnp.einsum("bnd,de->bne", ax, w_stack[l]) + b_stack[l]
        axw = axw + jnp.einsum("bnd,de->bne", outputs, w_stack[l]) + b_stack[l]
        axw = axw / denom
        outputs = jnp.maximum(axw, 0.0)
    return jnp.einsum("bnd,do->bno", outputs + x, w_out) + b_out


if __name__ == "__main__":
    # Small, module-consistent shapes.
    B, N, D, O, LAYERS = 4, 8, 32, 32, 2

    key = jax.random.PRNGKey(0)
    k_adj, k_x, k_w, k_b, k_wo, k_bo = jax.random.split(key, 6)

    # Dependency-graph-like adjacency (0/1), dense node features.
    adj = (jax.random.uniform(k_adj, (B, N, N)) < 0.3).astype(jnp.float32)
    x = jax.random.normal(k_x, (B, N, D), dtype=jnp.float32)

    # Deterministic parameter init (synthetic; no checkpoint load).
    # Weights are in "x @ W" convention (transposed vs torch nn.Linear (out,in)).
    w_stack = 0.1 * jax.random.normal(k_w, (LAYERS, D, D), dtype=jnp.float32)
    b_stack = 0.1 * jax.random.normal(k_b, (LAYERS, 1, D), dtype=jnp.float32)
    w_out = 0.1 * jax.random.normal(k_wo, (D, O), dtype=jnp.float32)
    b_out = 0.1 * jax.random.normal(k_bo, (1, O), dtype=jnp.float32)

    out = origin_graph_conv_layer(adj, x, w_stack, b_stack, w_out, b_out,
                                  layers=LAYERS, use_bf16_matmul=False)
    out = jax.block_until_ready(out)

    ref = _reference(adj, x, w_stack, b_stack, w_out, b_out, LAYERS)
    assert out.shape == (B, N, O)
    assert jnp.allclose(out, ref, atol=1e-4, rtol=1e-4), "mismatch vs pure-JAX reference"

    print("KERNEL_OK")
</pallas_src>

<mosaic_0001>
module attributes {stable_mosaic.version = 11 : i64} {
  func.func @_gcn_kernel(%arg0: i32, %arg1: memref<1x16x16xbf16, #tpu.memory_space<vmem>>, %arg2: memref<1x16x128xf32, #tpu.memory_space<vmem>>, %arg3: memref<2x128x128xf32, #tpu.memory_space<vmem>>, %arg4: memref<2x1x128xf32, #tpu.memory_space<vmem>>, %arg5: memref<128x128xf32, #tpu.memory_space<vmem>>, %arg6: memref<1x128xf32, #tpu.memory_space<vmem>>, %arg7: memref<1x16x128xf32, #tpu.memory_space<vmem>>) attributes {dimension_semantics = [#tpu.dimension_semantics<parallel>], iteration_bounds = array<i64: 4>, scalar_prefetch = 0 : i64, scratch_operands = 0 : i64, tpu.core_type = #tpu.core_type<tc>, window_params = [{transform_indices = @transform_0, window_bounds = array<i64: 1, 16, 16>}, {transform_indices = @transform_1, window_bounds = array<i64: 1, 16, 128>}, {pipeline_mode = #tpu.pipeline_mode<synchronous>, transform_indices = @transform_2, window_bounds = array<i64: 2, 128, 128>}, {pipeline_mode = #tpu.pipeline_mode<synchronous>, transform_indices = @transform_3, window_bounds = array<i64: 2, 1, 128>}, {pipeline_mode = #tpu.pipeline_mode<synchronous>, transform_indices = @transform_4, window_bounds = array<i64: 128, 128>}, {pipeline_mode = #tpu.pipeline_mode<synchronous>, transform_indices = @transform_5, window_bounds = array<i64: 1, 128>}, {transform_indices = @transform_6, window_bounds = array<i64: 1, 16, 128>}]} {
    %c0 = arith.constant 0 : index
    %c0_0 = arith.constant 0 : index
    %c0_1 = arith.constant 0 : index
    %0 = vector.load %arg1[%c0, %c0_0, %c0_1] : memref<1x16x16xbf16, #tpu.memory_space<vmem>>, vector<1x16x16xbf16>
    %1 = arith.extf %0 : vector<1x16x16xbf16> to vector<1x16x16xf32>
    %c0_2 = arith.constant 0 : index
    %c0_3 = arith.constant 0 : index
    %c0_4 = arith.constant 0 : index
    %2 = vector.load %arg2[%c0_2, %c0_3, %c0_4] : memref<1x16x128xf32, #tpu.memory_space<vmem>>, vector<1x16x128xf32>
    %cst = arith.constant dense<0.000000e+00> : vector<1x16xf32>
    %3 = vector.multi_reduction <add>, %1, %cst [2] : vector<1x16x16xf32> to vector<1x16xf32>
    %4 = vector.shape_cast %3 : vector<1x16xf32> to vector<1x16x1xf32>
    %cst_5 = arith.constant 1.000000e+00 : f32
    %5 = vector.broadcast %cst_5 : f32 to vector<1x16x1xf32>
    %6 = arith.addf %4, %5 : vector<1x16x1xf32>
    %7 = tpu.reciprocal %6 : vector<1x16x1xf32> -> vector<1x16x1xf32>
    %8 = vector.shape_cast %7 : vector<1x16x1xf32> to vector<16x1xf32>
    %c0_6 = arith.constant 0 : index
    %c0_7 = arith.constant 0 : index
    %c0_8 = arith.constant 0 : index
    %9 = vector.load %arg3[%c0_6, %c0_7, %c0_8] : memref<2x128x128xf32, #tpu.memory_space<vmem>>, vector<1x128x128xf32>
    %10 = vector.shape_cast %9 : vector<1x128x128xf32> to vector<128x128xf32>
    %c0_9 = arith.constant 0 : index
    %c0_10 = arith.constant 0 : index
    %c0_11 = arith.constant 0 : index
    %11 = vector.load %arg4[%c0_9, %c0_10, %c0_11] : memref<2x1x128xf32, #tpu.memory_space<vmem>>, vector<1x1x128xf32>
    %12 = vector.shape_cast %11 : vector<1x1x128xf32> to vector<1x128xf32>
    %13 = vector.shape_cast %1 : vector<1x16x16xf32> to vector<1x16x16x1xf32>
    %14 = vector.shape_cast %2 : vector<1x16x128xf32> to vector<1x1x16x128xf32>
    %15 = vector.broadcast %13 : vector<1x16x16x1xf32> to vector<1x16x16x128xf32>
    %16 = vector.broadcast %14 : vector<1x1x16x128xf32> to vector<1x16x16x128xf32>
    %17 = arith.mulf %15, %16 : vector<1x16x16x128xf32>
    %cst_12 = arith.constant dense<0.000000e+00> : vector<1x16x128xf32>
    %18 = vector.multi_reduction <add>, %17, %cst_12 [2] : vector<1x16x16x128xf32> to vector<1x16x128xf32>
    %19 = arith.addf %18, %2 : vector<1x16x128xf32>
    %20 = vector.shape_cast %19 : vector<1x16x128xf32> to vector<16x128xf32>
    %cst_13 = arith.constant dense<0.000000e+00> : vector<16x128xf32>
    %21 = tpu.matmul %20, %10, %cst_13 {dimension_numbers = #tpu.dot_dimension_numbers<[1], [0], [0], [1], [0, 0, 1, 1], [], []>} : vector<16x128xf32>, vector<128x128xf32>, vector<16x128xf32> -> vector<16x128xf32>
    %22 = vector.broadcast %12 : vector<1x128xf32> to vector<16x128xf32>
    %23 = arith.addf %21, %22 : vector<16x128xf32>
    %24 = vector.broadcast %8 : vector<16x1xf32> to vector<16x128xf32>
    %25 = arith.mulf %23, %24 : vector<16x128xf32>
    %cst_14 = arith.constant 0.000000e+00 : f32
    %26 = vector.broadcast %cst_14 : f32 to vector<16x128xf32>
    %27 = arith.maximumf %25, %26 : vector<16x128xf32>
    %28 = vector.shape_cast %27 : vector<16x128xf32> to vector<1x16x128xf32>
    %c1 = arith.constant 1 : index
    %c0_15 = arith.constant 0 : index
    %c0_16 = arith.constant 0 : index
    %29 = vector.load %arg3[%c1, %c0_15, %c0_16] : memref<2x128x128xf32, #tpu.memory_space<vmem>>, vector<1x128x128xf32>
    %30 = vector.shape_cast %29 : vector<1x128x128xf32> to vector<128x128xf32>
    %c1_17 = arith.constant 1 : index
    %c0_18 = arith.constant 0 : index
    %c0_19 = arith.constant 0 : index
    %31 = vector.load %arg4[%c1_17, %c0_18, %c0_19] : memref<2x1x128xf32, #tpu.memory_space<vmem>>, vector<1x1x128xf32>
    %32 = vector.shape_cast %31 : vector<1x1x128xf32> to vector<1x128xf32>
    %33 = vector.shape_cast %1 : vector<1x16x16xf32> to vector<1x16x16x1xf32>
    %34 = vector.shape_cast %28 : vector<1x16x128xf32> to vector<1x1x16x128xf32>
    %35 = vector.broadcast %33 : vector<1x16x16x1xf32> to vector<1x16x16x128xf32>
    %36 = vector.broadcast %34 : vector<1x1x16x128xf32> to vector<1x16x16x128xf32>
    %37 = arith.mulf %35, %36 : vector<1x16x16x128xf32>
    %cst_20 = arith.constant dense<0.000000e+00> : vector<1x16x128xf32>
    %38 = vector.multi_reduction <add>, %37, %cst_20 [2] : vector<1x16x16x128xf32> to vector<1x16x128xf32>
    %39 = arith.addf %38, %28 : vector<1x16x128xf32>
    %40 = vector.shape_cast %39 : vector<1x16x128xf32> to vector<16x128xf32>
    %cst_21 = arith.constant dense<0.000000e+00> : vector<16x128xf32>
    %41 = tpu.matmul %40, %30, %cst_21 {dimension_numbers = #tpu.dot_dimension_numbers<[1], [0], [0], [1], [0, 0, 1, 1], [], []>} : vector<16x128xf32>, vector<128x128xf32>, vector<16x128xf32> -> vector<16x128xf32>
    %42 = vector.broadcast %32 : vector<1x128xf32> to vector<16x128xf32>
    %43 = arith.addf %41, %42 : vector<16x128xf32>
    %44 = vector.broadcast %8 : vector<16x1xf32> to vector<16x128xf32>
    %45 = arith.mulf %43, %44 : vector<16x128xf32>
    %cst_22 = arith.constant 0.000000e+00 : f32
    %46 = vector.broadcast %cst_22 : f32 to vector<16x128xf32>
    %47 = arith.maximumf %45, %46 : vector<16x128xf32>
    %48 = vector.shape_cast %47 : vector<16x128xf32> to vector<1x16x128xf32>
    %49 = vector.shape_cast %48 : vector<1x16x128xf32> to vector<16x128xf32>
    %50 = vector.shape_cast %2 : vector<1x16x128xf32> to vector<16x128xf32>
    %51 = arith.addf %49, %50 : vector<16x128xf32>
    %c0_23 = arith.constant 0 : index
    %c0_24 = arith.constant 0 : index
    %52 = vector.load %arg5[%c0_23, %c0_24] : memref<128x128xf32, #tpu.memory_space<vmem>>, vector<128x128xf32>
    %cst_25 = arith.constant dense<0.000000e+00> : vector<16x128xf32>
    %53 = tpu.matmul %51, %52, %cst_25 {dimension_numbers = #tpu.dot_dimension_numbers<[1], [0], [0], [1], [0, 0, 1, 1], [], []>} : vector<16x128xf32>, vector<128x128xf32>, vector<16x128xf32> -> vector<16x128xf32>
    %c0_26 = arith.constant 0 : index
    %c0_27 = arith.constant 0 : index
    %54 = vector.load %arg6[%c0_26, %c0_27] : memref<1x128xf32, #tpu.memory_space<vmem>>, vector<1x128xf32>
    %55 = vector.broadcast %54 : vector<1x128xf32> to vector<16x128xf32>
    %56 = arith.addf %53, %55 : vector<16x128xf32>
    %57 = vector.shape_cast %56 : vector<16x128xf32> to vector<1x16x128xf32>
    %c0_28 = arith.constant 0 : index
    %c0_29 = arith.constant 0 : index
    %c0_30 = arith.constant 0 : index
    %58 = vector.load %arg7[%c0_28, %c0_29, %c0_30] : memref<1x16x128xf32, #tpu.memory_space<vmem>>, vector<1x16x128xf32>
    tpu.vector_store %arg7[%c0_28, %c0_29, %c0_30], %57 {strides = array<i32>} : memref<1x16x128xf32, #tpu.memory_space<vmem>>, vector<1x16x128xf32>,
    return
  }
  func.func @transform_0(%arg0: i32) -> (i32, i32, i32) {
    %c0_i32 = arith.constant 0 : i32
    %c0_i32_0 = arith.constant 0 : i32
    %c0_i32_1 = arith.constant 0 : i32
    return %arg0, %c0_i32, %c0_i32_0 : i32, i32, i32
  }
  func.func @transform_1(%arg0: i32) -> (i32, i32, i32) {
    %c0_i32 = arith.constant 0 : i32
    %c0_i32_0 = arith.constant 0 : i32
    %c0_i32_1 = arith.constant 0 : i32
    return %arg0, %c0_i32, %c0_i32_0 : i32, i32, i32
  }
  func.func @transform_2(%arg0: i32) -> (i32, i32, i32) {
    %c0_i32 = arith.constant 0 : i32
    %c0_i32_0 = arith.constant 0 : i32
    %c0_i32_1 = arith.constant 0 : i32
    %c0_i32_2 = arith.constant 0 : i32
    return %c0_i32, %c0_i32_0, %c0_i32_1 : i32, i32, i32
  }
  func.func @transform_3(%arg0: i32) -> (i32, i32, i32) {
    %c0_i32 = arith.constant 0 : i32
    %c0_i32_0 = arith.constant 0 : i32
    %c0_i32_1 = arith.constant 0 : i32
    %c0_i32_2 = arith.constant 0 : i32
    return %c0_i32, %c0_i32_0, %c0_i32_1 : i32, i32, i32
  }
  func.func @transform_4(%arg0: i32) -> (i32, i32) {
    %c0_i32 = arith.constant 0 : i32
    %c0_i32_0 = arith.constant 0 : i32
    %c0_i32_1 = arith.constant 0 : i32
    return %c0_i32, %c0_i32_0 : i32, i32
  }
  func.func @transform_5(%arg0: i32) -> (i32, i32) {
    %c0_i32 = arith.constant 0 : i32
    %c0_i32_0 = arith.constant 0 : i32
    %c0_i32_1 = arith.constant 0 : i32
    return %c0_i32, %c0_i32_0 : i32, i32
  }
  func.func @transform_6(%arg0: i32) -> (i32, i32, i32) {
    %c0_i32 = arith.constant 0 : i32
    %c0_i32_0 = arith.constant 0 : i32
    %c0_i32_1 = arith.constant 0 : i32
    return %arg0, %c0_i32, %c0_i32_0 : i32, i32, i32
  }
}

module attributes {stable_mosaic.version = 11 : i64} {
  func.func @_gcn_kernel(%arg0: i32, %arg1: memref<1x16x16xbf16, #tpu.memory_space<vmem>>, %arg2: memref<1x16x128xf32, #tpu.memory_space<vmem>>, %arg3: memref<2x128x128xf32, #tpu.memory_space<vmem>>, %arg4: memref<2x1x128xf32, #tpu.memory_space<vmem>>, %arg5: memref<128x128xf32, #tpu.memory_space<vmem>>, %arg6: memref<1x128xf32, #tpu.memory_space<vmem>>, %arg7: memref<1x16x128xf32, #tpu.memory_space<vmem>>) attributes {dimension_semantics = [#tpu.dimension_semantics<parallel>], iteration_bounds = array<i64: 4>, scalar_prefetch = 0 : i64, scratch_operands = 0 : i64, tpu.core_type = #tpu.core_type<tc>, window_params = [{transform_indices = @transform_0, window_bounds = array<i64: 1, 16, 16>}, {transform_indices = @transform_1, window_bounds = array<i64: 1, 16, 128>}, {pipeline_mode = #tpu.pipeline_mode<synchronous>, transform_indices = @transform_2, window_bounds = array<i64: 2, 128, 128>}, {pipeline_mode = #tpu.pipeline_mode<synchronous>, transform_indices = @transform_3, window_bounds = array<i64: 2, 1, 128>}, {pipeline_mode = #tpu.pipeline_mode<synchronous>, transform_indices = @transform_4, window_bounds = array<i64: 128, 128>}, {pipeline_mode = #tpu.pipeline_mode<synchronous>, transform_indices = @transform_5, window_bounds = array<i64: 1, 128>}, {transform_indices = @transform_6, window_bounds = array<i64: 1, 16, 128>}]} {
    %c0 = arith.constant 0 : index
    %c0_0 = arith.constant 0 : index
    %c0_1 = arith.constant 0 : index
    %0 = vector.load %arg1[%c0, %c0_0, %c0_1] : memref<1x16x16xbf16, #tpu.memory_space<vmem>>, vector<1x16x16xbf16>
    %1 = arith.extf %0 : vector<1x16x16xbf16> to vector<1x16x16xf32>
    %c0_2 = arith.constant 0 : index
    %c0_3 = arith.constant 0 : index
    %c0_4 = arith.constant 0 : index
    %2 = vector.load %arg2[%c0_2, %c0_3, %c0_4] : memref<1x16x128xf32, #tpu.memory_space<vmem>>, vector<1x16x128xf32>
    %cst = arith.constant dense<0.000000e+00> : vector<1x16xf32>
    %3 = vector.multi_reduction <add>, %1, %cst [2] : vector<1x16x16xf32> to vector<1x16xf32>
    %4 = vector.shape_cast %3 : vector<1x16xf32> to vector<1x16x1xf32>
    %cst_5 = arith.constant 1.000000e+00 : f32
    %5 = vector.broadcast %cst_5 : f32 to vector<1x16x1xf32>
    %6 = arith.addf %4, %5 : vector<1x16x1xf32>
    %7 = tpu.reciprocal %6 : vector<1x16x1xf32> -> vector<1x16x1xf32>
    %8 = vector.shape_cast %7 : vector<1x16x1xf32> to vector<16x1xf32>
    %c0_6 = arith.constant 0 : index
    %c0_7 = arith.constant 0 : index
    %c0_8 = arith.constant 0 : index
    %9 = vector.load %arg3[%c0_6, %c0_7, %c0_8] : memref<2x128x128xf32, #tpu.memory_space<vmem>>, vector<1x128x128xf32>
    %10 = vector.shape_cast %9 : vector<1x128x128xf32> to vector<128x128xf32>
    %c0_9 = arith.constant 0 : index
    %c0_10 = arith.constant 0 : index
    %c0_11 = arith.constant 0 : index
    %11 = vector.load %arg4[%c0_9, %c0_10, %c0_11] : memref<2x1x128xf32, #tpu.memory_space<vmem>>, vector<1x1x128xf32>
    %12 = vector.shape_cast %11 : vector<1x1x128xf32> to vector<1x128xf32>
    %13 = vector.shape_cast %1 : vector<1x16x16xf32> to vector<1x16x16x1xf32>
    %14 = vector.shape_cast %2 : vector<1x16x128xf32> to vector<1x1x16x128xf32>
    %15 = vector.broadcast %13 : vector<1x16x16x1xf32> to vector<1x16x16x128xf32>
    %16 = vector.broadcast %14 : vector<1x1x16x128xf32> to vector<1x16x16x128xf32>
    %17 = arith.mulf %15, %16 : vector<1x16x16x128xf32>
    %cst_12 = arith.constant dense<0.000000e+00> : vector<1x16x128xf32>
    %18 = vector.multi_reduction <add>, %17, %cst_12 [2] : vector<1x16x16x128xf32> to vector<1x16x128xf32>
    %19 = arith.addf %18, %2 : vector<1x16x128xf32>
    %20 = vector.shape_cast %19 : vector<1x16x128xf32> to vector<16x128xf32>
    %cst_13 = arith.constant dense<0.000000e+00> : vector<16x128xf32>
    %21 = tpu.matmul %20, %10, %cst_13 {dimension_numbers = #tpu.dot_dimension_numbers<[1], [0], [0], [1], [0, 0, 1, 1], [], []>} : vector<16x128xf32>, vector<128x128xf32>, vector<16x128xf32> -> vector<16x128xf32>
    %22 = vector.broadcast %12 : vector<1x128xf32> to vector<16x128xf32>
    %23 = arith.addf %21, %22 : vector<16x128xf32>
    %24 = vector.broadcast %8 : vector<16x1xf32> to vector<16x128xf32>
    %25 = arith.mulf %23, %24 : vector<16x128xf32>
    %cst_14 = arith.constant 0.000000e+00 : f32
    %26 = vector.broadcast %cst_14 : f32 to vector<16x128xf32>
    %27 = arith.maximumf %25, %26 : vector<16x128xf32>
    %28 = vector.shape_cast %27 : vector<16x128xf32> to vector<1x16x128xf32>
    %c1 = arith.constant 1 : index
    %c0_15 = arith.constant 0 : index
    %c0_16 = arith.constant 0 : index
    %29 = vector.load %arg3[%c1, %c0_15, %c0_16] : memref<2x128x128xf32, #tpu.memory_space<vmem>>, vector<1x128x128xf32>
    %30 = vector.shape_cast %29 : vector<1x128x128xf32> to vector<128x128xf32>
    %c1_17 = arith.constant 1 : index
    %c0_18 = arith.constant 0 : index
    %c0_19 = arith.constant 0 : index
    %31 = vector.load %arg4[%c1_17, %c0_18, %c0_19] : memref<2x1x128xf32, #tpu.memory_space<vmem>>, vector<1x1x128xf32>
    %32 = vector.shape_cast %31 : vector<1x1x128xf32> to vector<1x128xf32>
    %33 = vector.shape_cast %1 : vector<1x16x16xf32> to vector<1x16x16x1xf32>
    %34 = vector.shape_cast %28 : vector<1x16x128xf32> to vector<1x1x16x128xf32>
    %35 = vector.broadcast %33 : vector<1x16x16x1xf32> to vector<1x16x16x128xf32>
    %36 = vector.broadcast %34 : vector<1x1x16x128xf32> to vector<1x16x16x128xf32>
    %37 = arith.mulf %35, %36 : vector<1x16x16x128xf32>
    %cst_20 = arith.constant dense<0.000000e+00> : vector<1x16x128xf32>
    %38 = vector.multi_reduction <add>, %37, %cst_20 [2] : vector<1x16x16x128xf32> to vector<1x16x128xf32>
    %39 = arith.addf %38, %28 : vector<1x16x128xf32>
    %40 = vector.shape_cast %39 : vector<1x16x128xf32> to vector<16x128xf32>
    %cst_21 = arith.constant dense<0.000000e+00> : vector<16x128xf32>
    %41 = tpu.matmul %40, %30, %cst_21 {dimension_numbers = #tpu.dot_dimension_numbers<[1], [0], [0], [1], [0, 0, 1, 1], [], []>} : vector<16x128xf32>, vector<128x128xf32>, vector<16x128xf32> -> vector<16x128xf32>
    %42 = vector.broadcast %32 : vector<1x128xf32> to vector<16x128xf32>
    %43 = arith.addf %41, %42 : vector<16x128xf32>
    %44 = vector.broadcast %8 : vector<16x1xf32> to vector<16x128xf32>
    %45 = arith.mulf %43, %44 : vector<16x128xf32>
    %cst_22 = arith.constant 0.000000e+00 : f32
    %46 = vector.broadcast %cst_22 : f32 to vector<16x128xf32>
    %47 = arith.maximumf %45, %46 : vector<16x128xf32>
    %48 = vector.shape_cast %47 : vector<16x128xf32> to vector<1x16x128xf32>
    %49 = vector.shape_cast %48 : vector<1x16x128xf32> to vector<16x128xf32>
    %50 = vector.shape_cast %2 : vector<1x16x128xf32> to vector<16x128xf32>
    %51 = arith.addf %49, %50 : vector<16x128xf32>
    %c0_23 = arith.constant 0 : index
    %c0_24 = arith.constant 0 : index
    %52 = vector.load %arg5[%c0_23, %c0_24] : memref<128x128xf32, #tpu.memory_space<vmem>>, vector<128x128xf32>
    %cst_25 = arith.constant dense<0.000000e+00> : vector<16x128xf32>
    %53 = tpu.matmul %51, %52, %cst_25 {dimension_numbers = #tpu.dot_dimension_numbers<[1], [0], [0], [1], [0, 0, 1, 1], [], []>} : vector<16x128xf32>, vector<128x128xf32>, vector<16x128xf32> -> vector<16x128xf32>
    %c0_26 = arith.constant 0 : index
    %c0_27 = arith.constant 0 : index
    %54 = vector.load %arg6[%c0_26, %c0_27] : memref<1x128xf32, #tpu.memory_space<vmem>>, vector<1x128xf32>
    %55 = vector.broadcast %54 : vector<1x128xf32> to vector<16x128xf32>
    %56 = arith.addf %53, %55 : vector<16x128xf32>
    %57 = vector.shape_cast %56 : vector<16x128xf32> to vector<1x16x128xf32>
    %c0_28 = arith.constant 0 : index
    %c0_29 = arith.constant 0 : index
    %c0_30 = arith.constant 0 : index
    %58 = vector.load %arg7[%c0_28, %c0_29, %c0_30] : memref<1x16x128xf32, #tpu.memory_space<vmem>>, vector<1x16x128xf32>
    tpu.vector_store %arg7[%c0_28, %c0_29, %c0_30], %57 {strides = array<i32>} : memref<1x16x128xf32, #tpu.memory_space<vmem>>, vector<1x16x128xf32>,
    return
  }
  func.func @transform_0(%arg0: i32) -> (i32, i32, i32) {
    %c0_i32 = arith.constant 0 : i32
    %c0_i32_0 = arith.constant 0 : i32
    %c0_i32_1 = arith.constant 0 : i32
    return %arg0, %c0_i32, %c0_i32_0 : i32, i32, i32
  }
  func.func @transform_1(%arg0: i32) -> (i32, i32, i32) {
    %c0_i32 = arith.constant 0 : i32
    %c0_i32_0 = arith.constant 0 : i32
    %c0_i32_1 = arith.constant 0 : i32
    return %arg0, %c0_i32, %c0_i32_0 : i32, i32, i32
  }
  func.func @transform_2(%arg0: i32) -> (i32, i32, i32) {
    %c0_i32 = arith.constant 0 : i32
    %c0_i32_0 = arith.constant 0 : i32
    %c0_i32_1 = arith.constant 0 : i32
    %c0_i32_2 = arith.constant 0 : i32
    return %c0_i32, %c0_i32_0, %c0_i32_1 : i32, i32, i32
  }
  func.func @transform_3(%arg0: i32) -> (i32, i32, i32) {
    %c0_i32 = arith.constant 0 : i32
    %c0_i32_0 = arith.constant 0 : i32
    %c0_i32_1 = arith.constant 0 : i32
    %c0_i32_2 = arith.constant 0 : i32
    return %c0_i32, %c0_i32_0, %c0_i32_1 : i32, i32, i32
  }
  func.func @transform_4(%arg0: i32) -> (i32, i32) {
    %c0_i32 = arith.constant 0 : i32
    %c0_i32_0 = arith.constant 0 : i32
    %c0_i32_1 = arith.constant 0 : i32
    return %c0_i32, %c0_i32_0 : i32, i32
  }
  func.func @transform_5(%arg0: i32) -> (i32, i32) {
    %c0_i32 = arith.constant 0 : i32
    %c0_i32_0 = arith.constant 0 : i32
    %c0_i32_1 = arith.constant 0 : i32
    return %c0_i32, %c0_i32_0 : i32, i32
  }
  func.func @transform_6(%arg0: i32) -> (i32, i32, i32) {
    %c0_i32 = arith.constant 0 : i32
    %c0_i32_0 = arith.constant 0 : i32
    %c0_i32_1 = arith.constant 0 : i32
    return %arg0, %c0_i32, %c0_i32_0 : i32, i32, i32
  }
}

</mosaic_0001>

<llo_original>
// kernel: tpu_custom_call.1
$region0: #{tpu_custom_call.1}
  #allocation0 [shape = 'u32[]', space=smem, size = 0x4, offset = 0x4, fixed_abs, tag = 'smem constant byte address 0x4 - core index']
  #allocation1 [shape = 'u32[144,128]{1,0:T(1,128)}', space=vmem, size = 0x12000, scoped, tag = 'internal scratch']
  %s0 = inlined_call_operand.hbm [shape: bf16[4,16,16], index: 0, kind: input, shape index: {}]
  %s1 = inlined_call_operand.hbm [shape: f32[4,16,128], index: 1, kind: input, shape index: {}]
  %s2 = inlined_call_operand.hbm [shape: f32[2,128,128], index: 2, kind: input, shape index: {}]
  %s3 = inlined_call_operand.vmem [shape: f32[2,1,128], index: 3, kind: input, shape index: {}]
  %s4 = inlined_call_operand.hbm [shape: f32[128,128], index: 4, kind: input, shape index: {}]
  %s5 = inlined_call_operand.vmem [shape: f32[1,128], index: 5, kind: input, shape index: {}]
  %s6 = inlined_call_operand.hbm [shape: f32[4,16,128], index: 6, kind: output, shape index: {}]
  %s7 = sld [smem:[#allocation0]]
  $region73: #{tpu_custom_call.1} parent=0
    _
  %s9 = ssub.s32 1, %s7
  %s10 = scalar_select 0, %s9, %s7
  $region1: #{tpu_custom_call.1} parent=0
    #allocation2 [shape = 'u8[8192]{0}', space=vmem, size = 0x2000, scoped, tag = 'input window, operand 0']
    #allocation3 [shape = 's32[2]{0}', space=sflag, size = 0x8, scoped, tag = 'scoped memory for tpu_custom_call.1']
    #allocation4 [shape = 's32[2]{0}', space=sflag, size = 0x8, scoped, tag = 'scoped memory for tpu_custom_call.1']
    #allocation5 [shape = 'u8[16384]{0}', space=vmem, size = 0x4000, scoped, tag = 'input window, operand 1']
    #allocation6 [shape = 's32[2]{0}', space=sflag, size = 0x8, scoped, tag = 'scoped memory for tpu_custom_call.1']
    #allocation7 [shape = 'u8[131072]{0}', space=vmem, size = 0x20000, scoped, tag = 'input window, operand 2, single buffered']
    #allocation8 [shape = 'u8[65536]{0}', space=vmem, size = 0x10000, scoped, tag = 'input window, operand 4, single buffered']
    #allocation9 [shape = 's32[1]{0}', space=sflag, size = 0x4, scoped, tag = 'scoped memory for tpu_custom_call.1']
    #allocation10 [shape = 'u8[16384]{0}', space=vmem, size = 0x4000, scoped, tag = 'output window, operand 0']
    %11 = vsyncpa [#allocation3], 0
    %s12 = scalar_lea.sflag [#allocation3], 1
    %13 = vsyncpa %s12, 0
    %14 = vsyncpa [#allocation6], 0
    %s15 = scalar_lea.sflag [#allocation6], 1
    %16 = vsyncpa %s15, 0
    %17 = vsyncpa [#allocation9], 0
    %18 = vsyncpa [#allocation4], 0
    %s19 = scalar_lea.sflag [#allocation4], 1
    %20 = vsyncpa %s19, 0
    loop: start=0, step=1, limit=6
    $region2: #{tpu_custom_call.1} parent=1 // loop_pre_header
      _
    $region3: #{tpu_custom_call.1} parent=1 // loop_header
      %s22 = sphi 0, %s26
      %p23 = scmp.ge.s32.totalorder %s22, 6
      %s32 = sphi 0, %s34
      %s35 = sphi 0, %s32
      %s36 = sphi 0, %s35
      %s52 = sphi 0, %s36
      %s58 = sphi 0, %s60
      %s61 = sphi 0, %s58
      %s62 = sphi 0, %s61
      %s78 = sphi 0, %s62
      %s82 = sphi 0, %s82
      %s84 = sphi 0, %s82
      %s85 = sphi 0, %s84
      %s99 = sphi 0, %s85
      %s103 = sphi 0, %s103
      %s105 = sphi 0, %s103
      %s106 = sphi 0, %s105
      %s120 = sphi 0, %s106
      %s124 = sphi 0, %s124
      %s126 = sphi 0, %s124
      %s127 = sphi 0, %s126
      %s141 = sphi 0, %s127
      %s145 = sphi 0, %s145
      %s147 = sphi 0, %s145
      %s148 = sphi 0, %s147
      %s162 = sphi 0, %s148
      %s168 = sphi 0, %s170
      %s171 = sphi 0, %s168
      %s172 = sphi 0, %s171
      %s188 = sphi 0, %s172
    $region4: #{tpu_custom_call.1} parent=1 // loop_header_branch
      %25 = sbr.rel (%p23) target = $region8
    $region5: #{tpu_custom_call.1} parent=1 // loop_body
      %s27 = ssub.s32 %s22, 1
      %s28 = ssub.s32 %s22, 2
      %s29 = sadd.s32 %s22, 1
      %s30 = ssub.s32 %s22, %s29
      %p31 = scmp.eq.s32.totalorder %s30, 0
      %s33 = sadd.s32 %s32, 1
      %s34 = scalar_select %p31, %s32, %s33
      %p37 = pneg %p31
      %p38 = scmp.eq.s32.totalorder %s22, 3
      %p39 = por %p37, %p38
      %p40 = scmp.ne.s32.totalorder %s32, %s35
      %p41 = scmp.eq.s32.totalorder %s22, 0
      %p42 = por %p40, %p41
      %p43 = scmp.ne.s32.totalorder %s32, %s35
      %p44 = scmp.eq.s32.totalorder %s27, 3
      %p45 = por %p43, %p44
      %p46 = scmp.ne.s32.totalorder %s35, %s36
      %p47 = scmp.eq.s32.totalorder %s27, 0
      %p48 = por %p46, %p47
      %p49 = scmp.ne.s32.totalorder %s35, %s36
      %p50 = scmp.eq.s32.totalorder %s28, 3
      %p51 = por %p49, %p50
      %p53 = scmp.ne.s32.totalorder %s36, %s52
      %p54 = scmp.eq.s32.totalorder %s28, 0
      %p55 = por %p53, %p54
      %s56 = ssub.s32 %s22, %s29
      %p57 = scmp.eq.s32.totalorder %s56, 0
      %s59 = sadd.s32 %s58, 1
      %s60 = scalar_select %p57, %s58, %s59
      %p63 = pneg %p57
      %p64 = scmp.eq.s32.totalorder %s22, 3
      %p65 = por %p63, %p64
      %p66 = scmp.ne.s32.totalorder %s58, %s61
      %p67 = scmp.eq.s32.totalorder %s22, 0
      %p68 = por %p66, %p67
      %p69 = scmp.ne.s32.totalorder %s58, %s61
      %p70 = scmp.eq.s32.totalorder %s27, 3
      %p71 = por %p69, %p70
      %p72 = scmp.ne.s32.totalorder %s61, %s62
      %p73 = scmp.eq.s32.totalorder %s27, 0
      %p74 = por %p72, %p73
      %p75 = scmp.ne.s32.totalorder %s61, %s62
      %p76 = scmp.eq.s32.totalorder %s28, 3
      %p77 = por %p75, %p76
      %p79 = scmp.ne.s32.totalorder %s62, %s78
      %p80 = scmp.eq.s32.totalorder %s28, 0
      %p81 = por %p79, %p80
      %s83 = sadd.s32 %s82, 1
      %p86 = scmp.eq.s32.totalorder %s22, 3
      %p87 = scmp.ne.s32.totalorder %s82, %s84
      %p88 = scmp.eq.s32.totalorder %s22, 0
      %p89 = por %p87, %p88
      %p90 = scmp.ne.s32.totalorder %s82, %s84
      %p91 = scmp.eq.s32.totalorder %s27, 3
      %p92 = por %p90, %p91
      %p93 = scmp.ne.s32.totalorder %s84, %s85
      %p94 = scmp.eq.s32.totalorder %s27, 0
      %p95 = por %p93, %p94
      %p96 = scmp.ne.s32.totalorder %s84, %s85
      %p97 = scmp.eq.s32.totalorder %s28, 3
      %p98 = por %p96, %p97
      %p100 = scmp.ne.s32.totalorder %s85, %s99
      %p101 = scmp.eq.s32.totalorder %s28, 0
      %p102 = por %p100, %p101
      %s104 = sadd.s32 %s103, 1
      %p107 = scmp.eq.s32.totalorder %s22, 3
      %p108 = scmp.ne.s32.totalorder %s103, %s105
      %p109 = scmp.eq.s32.totalorder %s22, 0
      %p110 = por %p108, %p109
      %p111 = scmp.ne.s32.totalorder %s103, %s105
      %p112 = scmp.eq.s32.totalorder %s27, 3
      %p113 = por %p111, %p112
      %p114 = scmp.ne.s32.totalorder %s105, %s106
      %p115 = scmp.eq.s32.totalorder %s27, 0
      %p116 = por %p114, %p115
      %p117 = scmp.ne.s32.totalorder %s105, %s106
      %p118 = scmp.eq.s32.totalorder %s28, 3
      %p119 = por %p117, %p118
      %p121 = scmp.ne.s32.totalorder %s106, %s120
      %p122 = scmp.eq.s32.totalorder %s28, 0
      %p123 = por %p121, %p122
      %s125 = sadd.s32 %s124, 1
      %p128 = scmp.eq.s32.totalorder %s22, 3
      %p129 = scmp.ne.s32.totalorder %s124, %s126
      %p130 = scmp.eq.s32.totalorder %s22, 0
      %p131 = por %p129, %p130
      %p132 = scmp.ne.s32.totalorder %s124, %s126
      %p133 = scmp.eq.s32.totalorder %s27, 3
      %p134 = por %p132, %p133
      %p135 = scmp.ne.s32.totalorder %s126, %s127
      %p136 = scmp.eq.s32.totalorder %s27, 0
      %p137 = por %p135, %p136
      %p138 = scmp.ne.s32.totalorder %s126, %s127
      %p139 = scmp.eq.s32.totalorder %s28, 3
      %p140 = por %p138, %p139
      %p142 = scmp.ne.s32.totalorder %s127, %s141
      %p143 = scmp.eq.s32.totalorder %s28, 0
      %p144 = por %p142, %p143
      %s146 = sadd.s32 %s145, 1
      %p149 = scmp.eq.s32.totalorder %s22, 3
      %p150 = scmp.ne.s32.totalorder %s145, %s147
      %p151 = scmp.eq.s32.totalorder %s22, 0
      %p152 = por %p150, %p151
      %p153 = scmp.ne.s32.totalorder %s145, %s147
      %p154 = scmp.eq.s32.totalorder %s27, 3
      %p155 = por %p153, %p154
      %p156 = scmp.ne.s32.totalorder %s147, %s148
      %p157 = scmp.eq.s32.totalorder %s27, 0
      %p158 = por %p156, %p157
      %p159 = scmp.ne.s32.totalorder %s147, %s148
      %p160 = scmp.eq.s32.totalorder %s28, 3
      %p161 = por %p159, %p160
      %p163 = scmp.ne.s32.totalorder %s148, %s162
      %p164 = scmp.eq.s32.totalorder %s28, 0
      %p165 = por %p163, %p164
      %s166 = ssub.s32 %s22, %s29
      %p167 = scmp.eq.s32.totalorder %s166, 0
      %s169 = sadd.s32 %s168, 1
      %s170 = scalar_select %p167, %s168, %s169
      %p173 = pneg %p167
      %p174 = scmp.eq.s32.totalorder %s22, 3
      %p175 = por %p173, %p174
      %p176 = scmp.ne.s32.totalorder %s168, %s171
      %p177 = scmp.eq.s32.totalorder %s22, 0
      %p178 = por %p176, %p177
      %p179 = scmp.ne.s32.totalorder %s168, %s171
      %p180 = scmp.eq.s32.totalorder %s27, 3
      %p181 = por %p179, %p180
      %p182 = scmp.ne.s32.totalorder %s171, %s172
      %p183 = scmp.eq.s32.totalorder %s27, 0
      %p184 = por %p182, %p183
      %p185 = scmp.ne.s32.totalorder %s171, %s172
      %p186 = scmp.eq.s32.totalorder %s28, 3
      %p187 = por %p185, %p186
      %p189 = scmp.ne.s32.totalorder %s172, %s188
      %p190 = scmp.eq.s32.totalorder %s28, 0
      %p191 = por %p189, %p190
      %p192 = scmp.le.s32.totalorder 1, %s22
      %p193 = scmp.lt.s32.totalorder %s22, 5
      %p194 = pnand %p192, %p193
      %p195 = pneg %p194
      // Predicated region
      $region9: #{tpu_custom_call.1} parent=5 // pred_check
        _
      $region10: #{tpu_custom_call.1} parent=5 // pred_check_branch
        %197 = sbr.rel (%p194) target = $region12
      $region11: #{tpu_custom_call.1} parent=5 // pred_region
        %s198 = ssub.s32 %s22, 1
        // Predicated region
        $region13: #{tpu_custom_call.1} parent=11 // pred_check
          %p199 = pneg %p95
        $region14: #{tpu_custom_call.1} parent=11 // pred_check_branch
          %201 = sbr.rel (%p199) target = $region16
        $region15: #{tpu_custom_call.1} parent=11 // pred_region
          %s203 = ssub.s32 4096, 4096
          %204 = vsyncadd [#allocation6], %s203
          %s205 = sshll.u32 [#allocation7], 4
          %s206 = int_to_ptr.vmem [resolvable:$true] %s205
          %211 = dma.hbm_to_vmem [thread:$0]  %s2, 4096, %s206, [#allocation6], 128, 128, 8
        $region16: #{tpu_custom_call.1} parent=11 // pred_fallthru
          _
        // Predicated region
        $region17: #{tpu_custom_call.1} parent=11 // pred_check
          %p212 = pneg %p116
        $region18: #{tpu_custom_call.1} parent=11 // pred_check_branch
          %214 = sbr.rel (%p212) target = $region20
        $region19: #{tpu_custom_call.1} parent=11 // pred_region
          _
        $region20: #{tpu_custom_call.1} parent=11 // pred_fallthru
          _
        // Predicated region
        $region21: #{tpu_custom_call.1} parent=11 // pred_check
          %p215 = pneg %p137
        $region22: #{tpu_custom_call.1} parent=11 // pred_check_branch
          %217 = sbr.rel (%p215) target = $region24
        $region23: #{tpu_custom_call.1} parent=11 // pred_region
          %s219 = ssub.s32 2048, 2048
          %220 = vsyncadd [#allocation9], %s219
          %s221 = sshll.u32 [#allocation8], 4
          %s222 = int_to_ptr.vmem [resolvable:$true] %s221
          %227 = dma.hbm_to_vmem [thread:$0]  %s4, 2048, %s222, [#allocation9], 128, 128, 8
        $region24: #{tpu_custom_call.1} parent=11 // pred_fallthru
          _
        // Predicated region
        $region25: #{tpu_custom_call.1} parent=11 // pred_check
          %p228 = pneg %p158
        $region26: #{tpu_custom_call.1} parent=11 // pred_check_branch
          %230 = sbr.rel (%p228) target = $region28
        $region27: #{tpu_custom_call.1} parent=11 // pred_region
          _
        $region28: #{tpu_custom_call.1} parent=11 // pred_fallthru
          _
      $region12: #{tpu_custom_call.1} parent=5 // pred_fallthru
        _
      %p231 = scmp.lt.s32.totalorder %s22, 4
      // Predicated region
      $region29: #{tpu_custom_call.1} parent=5 // pred_check
        %p232 = pneg %p231
      $region30: #{tpu_custom_call.1} parent=5 // pred_check_branch
        %234 = sbr.rel (%p232) target = $region32
      $region31: #{tpu_custom_call.1} parent=5 // pred_region
        // Predicated region
        $region33: #{tpu_custom_call.1} parent=31 // pred_check
          %p235 = pneg %p42
        $region34: #{tpu_custom_call.1} parent=31 // pred_check_branch
          %237 = sbr.rel (%p235) target = $region36
        $region35: #{tpu_custom_call.1} parent=31 // pred_region
          %s238 = sand.u32 %s32, 1
          %s239 = scalar_lea.sflag [#allocation3], %s238
          %s240 = sand.u32 %s32, 1
          %s241 = smul.addr %s240, 8
          %s242 = scalar_lea.vmem [#allocation2], %s241
          %s244 = ssub.s32 128, 128
          %245 = vsyncadd %s239, %s244
          %s246 = smul.addr %s22, 2
          %s247 = smul.addr %s246, 64
          %s248 = scalar_lea.hbm %s0, %s247
          %s249 = sshll.u32 %s242, 4
          %s250 = int_to_ptr.vmem [resolvable:$true] %s249
          %255 = dma.hbm_to_vmem [thread:$0]  %s248, 128, %s250, %s239, 64, 64, 4
        $region36: #{tpu_custom_call.1} parent=31 // pred_fallthru
          _
        // Predicated region
        $region37: #{tpu_custom_call.1} parent=31 // pred_check
          %p256 = pneg %p68
        $region38: #{tpu_custom_call.1} parent=31 // pred_check_branch
          %258 = sbr.rel (%p256) target = $region40
        $region39: #{tpu_custom_call.1} parent=31 // pred_region
          %s259 = sand.u32 %s22, 1
          %s260 = scalar_lea.sflag [#allocation6], %s259
          %s261 = sand.u32 %s58, 1
          %s262 = smul.addr %s261, 16
          %s263 = scalar_lea.vmem [#allocation5], %s262
          %s265 = ssub.s32 256, 256
          %266 = vsyncadd %s260, %s265
          %s267 = smul.addr %s22, 2
          %s268 = smul.addr %s267, 128
          %s269 = scalar_lea.hbm %s1, %s268
          %s270 = sshll.u32 %s263, 4
          %s271 = int_to_ptr.vmem [resolvable:$true] %s270
          %276 = dma.hbm_to_vmem [thread:$0]  %s269, 256, %s271, %s260, 128, 128, 8
        $region40: #{tpu_custom_call.1} parent=31 // pred_fallthru
          _
      $region32: #{tpu_custom_call.1} parent=5 // pred_fallthru
        _
      %p277 = scmp.le.s32.totalorder 1, %s22
      %p278 = scmp.lt.s32.totalorder %s22, 5
      %p279 = pnand %p277, %p278
      %p280 = pneg %p279
      // Predicated region
      $region41: #{tpu_custom_call.1} parent=5 // pred_check
        _
      $region42: #{tpu_custom_call.1} parent=5 // pred_check_branch
        %282 = sbr.rel (%p279) target = $region44
      $region43: #{tpu_custom_call.1} parent=5 // pred_region
        %s283 = ssub.s32 %s22, 1
        %s284 = sand.u32 %s35, 1
        %s285 = scalar_lea.sflag [#allocation3], %s284
        %s286 = sand.u32 %s35, 1
        %s287 = smul.addr %s286, 8
        %s288 = scalar_lea.vmem [#allocation2], %s287
        // Predicated region
        $region45: #{tpu_custom_call.1} parent=43 // pred_check
          %p289 = pneg %p48
        $region46: #{tpu_custom_call.1} parent=43 // pred_check_branch
          %291 = sbr.rel (%p289) target = $region48
        $region47: #{tpu_custom_call.1} parent=43 // pred_region
          %292 = dma.done %s285, 128
        $region48: #{tpu_custom_call.1} parent=43 // pred_fallthru
          _
        %s293 = sand.u32 %s27, 1
        %s294 = scalar_lea.sflag [#allocation6], %s293
        %s295 = sand.u32 %s61, 1
        %s296 = smul.addr %s295, 16
        %s297 = scalar_lea.vmem [#allocation5], %s296
        // Predicated region
        $region49: #{tpu_custom_call.1} parent=43 // pred_check
          %p298 = pneg %p74
        $region50: #{tpu_custom_call.1} parent=43 // pred_check_branch
          %300 = sbr.rel (%p298) target = $region52
        $region51: #{tpu_custom_call.1} parent=43 // pred_region
          %301 = dma.done %s294, 256
        $region52: #{tpu_custom_call.1} parent=43 // pred_fallthru
          _
        // Predicated region
        $region53: #{tpu_custom_call.1} parent=43 // pred_check
          %p302 = pneg %p95
        $region54: #{tpu_custom_call.1} parent=43 // pred_check_branch
          %304 = sbr.rel (%p302) target = $region56
        $region55: #{tpu_custom_call.1} parent=43 // pred_region
          %305 = dma.done [#allocation6], 4096
        $region56: #{tpu_custom_call.1} parent=43 // pred_fallthru
          _
        // Predicated region
        $region57: #{tpu_custom_call.1} parent=43 // pred_check
          %p306 = pneg %p137
        $region58: #{tpu_custom_call.1} parent=43 // pred_check_branch
          %308 = sbr.rel (%p306) target = $region60
        $region59: #{tpu_custom_call.1} parent=43 // pred_region
          %309 = dma.done [#allocation9], 2048
        $region60: #{tpu_custom_call.1} parent=43 // pred_fallthru
          _
        %s310 = sand.u32 %s35, 1
        %s311 = scalar_lea.sflag [#allocation3], %s310
        %s312 = sand.u32 %s35, 1
        %s313 = smul.addr %s312, 8
        %s314 = scalar_lea.vmem [#allocation2], %s313
        %p315 = pneg %p48
        %p316 = pneg %p45
        %s317 = sand.u32 %s27, 1
        %s318 = scalar_lea.sflag [#allocation6], %s317
        %s319 = sand.u32 %s61, 1
        %s320 = smul.addr %s319, 16
        %s321 = scalar_lea.vmem [#allocation5], %s320
        %p322 = pneg %p74
        %p323 = pneg %p71
        %p324 = pneg %p95
        %p325 = pneg %p92
        %p326 = pneg %p116
        %p327 = pneg %p113
        %p328 = pneg %p137
        %p329 = pneg %p134
        %p330 = pneg %p158
        %p331 = pneg %p155
        %p332 = pneg %p184
        %p333 = pneg %p181
        %s334 = sand.u32 %s171, 1
        %s335 = scalar_lea.sflag [#allocation4], %s334
        %s336 = sand.u32 %s171, 1
        %s337 = smul.addr %s336, 16
        %s338 = scalar_lea.vmem [#allocation10], %s337
        %v339 = vld [vmem:[%s288] sm:$0xf]
        %v340 = vld [vmem:[%s288 + $0x4] sm:$0xf]
        %v341 = vunpack.c.l.bf16 %v339
        %v342 = vunpack.c.l.bf16 %v340
        %v343 = vld [vmem:[%s297] sm:$0xff]
        %v344 = vld [vmem:[%s297 + $0x8] sm:$0xff]
        %vm345 = vcmask 130048
        %v346 = vsel %vm345, %v341, 0.0
        %347 = vadd.xlane.f32.xlu0 %v346
        %v348 = vpop.xlane.xlu0 %347
        %v349 = vsel %vm345, %v342, 0.0
        %350 = vadd.xlane.f32.xlu0 %v349
        %v351 = vpop.xlane.xlu0 %350
        %v352 = vadd.f32 %v348, 1.0
        %v353 = vadd.f32 %v351, 1.0
        %v354 = vrcp.pop %v352
        %v355 = vrcp.pop %v353
        %v356 = vld [vmem:[#allocation7] sm:$0xff]
        %v357 = vld [vmem:[#allocation7 + $0x8] sm:$0xff]
        %v358 = vld [vmem:[#allocation7 + $0x10] sm:$0xff]
        %v359 = vld [vmem:[#allocation7 + $0x18] sm:$0xff]
        %v360 = vld [vmem:[#allocation7 + $0x20] sm:$0xff]
        %v361 = vld [vmem:[#allocation7 + $0x28] sm:$0xff]
        %v362 = vld [vmem:[#allocation7 + $0x30] sm:$0xff]
        %v363 = vld [vmem:[#allocation7 + $0x38] sm:$0xff]
        %v364 = vld [vmem:[#allocation7 + $0x40] sm:$0xff]
        %v365 = vld [vmem:[#allocation7 + $0x48] sm:$0xff]
        %v366 = vld [vmem:[#allocation7 + $0x50] sm:$0xff]
        %v367 = vld [vmem:[#allocation7 + $0x58] sm:$0xff]
        %v368 = vld [vmem:[#allocation7 + $0x60] sm:$0xff]
        %v369 = vld [vmem:[#allocation7 + $0x68] sm:$0xff]
        %v370 = vld [vmem:[#allocation7 + $0x70] sm:$0xff]
        %v371 = vld [vmem:[#allocation7 + $0x78] sm:$0xff]
        %v372 = vld [vmem:[%s3] sm:$0x1]
        %v373 = vlaneseq
        %v374 = vshrl.u32 %v373, 7
        %v375 = vsub.s32 0, %v374
        %v376 = vrot.slane %v341, %v375
        %378 = vbcast.lane.b32.xlu0 %v376, 256
        %v379 = vpop.permute.xlu0 %378
        %s381 = sor.u32 256, 8
        %382 = vbcast.lane.b32.xlu0 %v376, %s381
        %v383 = vpop.permute.xlu0 %382
        %v384 = vlaneseq
        %v385 = vshrl.u32 %v384, 7
        %v386 = vsub.s32 1, %v385
        %v387 = vrot.slane %v341, %v386
        %389 = vbcast.lane.b32.xlu0 %v387, 256
        %v390 = vpop.permute.xlu0 %389
        %s392 = sor.u32 256, 8
        %393 = vbcast.lane.b32.xlu0 %v387, %s392
        %v394 = vpop.permute.xlu0 %393
        %v395 = vlaneseq
        %v396 = vshrl.u32 %v395, 7
        %v397 = vsub.s32 2, %v396
        %v398 = vrot.slane %v341, %v397
        %400 = vbcast.lane.b32.xlu0 %v398, 256
        %v401 = vpop.permute.xlu0 %400
        %s403 = sor.u32 256, 8
        %404 = vbcast.lane.b32.xlu0 %v398, %s403
        %v405 = vpop.permute.xlu0 %404
        %v406 = vlaneseq
        %v407 = vshrl.u32 %v406, 7
        %v408 = vsub.s32 3, %v407
        %v409 = vrot.slane %v341, %v408
        %411 = vbcast.lane.b32.xlu0 %v409, 256
        %v412 = vpop.permute.xlu0 %411
        %s414 = sor.u32 256, 8
        %415 = vbcast.lane.b32.xlu0 %v409, %s414
        %v416 = vpop.permute.xlu0 %415
        %v417 = vlaneseq
        %v418 = vshrl.u32 %v417, 7
        %v419 = vsub.s32 4, %v418
        %v420 = vrot.slane %v341, %v419
        %422 = vbcast.lane.b32.xlu0 %v420, 256
        %v423 = vpop.permute.xlu0 %422
        %s425 = sor.u32 256, 8
        %426 = vbcast.lane.b32.xlu0 %v420, %s425
        %v427 = vpop.permute.xlu0 %426
        %v428 = vlaneseq
        %v429 = vshrl.u32 %v428, 7
        %v430 = vsub.s32 5, %v429
        %v431 = vrot.slane %v341, %v430
        %433 = vbcast.lane.b32.xlu0 %v431, 256
        %v434 = vpop.permute.xlu0 %433
        %s436 = sor.u32 256, 8
        %437 = vbcast.lane.b32.xlu0 %v431, %s436
        %v438 = vpop.permute.xlu0 %437
        %v439 = vlaneseq
        %v440 = vshrl.u32 %v439, 7
        %v441 = vsub.s32 6, %v440
        %v442 = vrot.slane %v341, %v441
        %444 = vbcast.lane.b32.xlu0 %v442, 256
        %v445 = vpop.permute.xlu0 %444
        %s447 = sor.u32 256, 8
        %448 = vbcast.lane.b32.xlu0 %v442, %s447
        %v449 = vpop.permute.xlu0 %448
        %v450 = vlaneseq
        %v451 = vshrl.u32 %v450, 7
        %v452 = vsub.s32 7, %v451
        %v453 = vrot.slane %v341, %v452
        %455 = vbcast.lane.b32.xlu0 %v453, 256
        %v456 = vpop.permute.xlu0 %455
        %s458 = sor.u32 256, 8
        %459 = vbcast.lane.b32.xlu0 %v453, %s458
        %v460 = vpop.permute.xlu0 %459
        %v461 = vlaneseq
        %v462 = vshrl.u32 %v461, 7
        %v463 = vsub.s32 0, %v462
        %v464 = vrot.slane %v342, %v463
        %466 = vbcast.lane.b32.xlu0 %v464, 256
        %v467 = vpop.permute.xlu0 %466
        %s469 = sor.u32 256, 8
        %470 = vbcast.lane.b32.xlu0 %v464, %s469
        %v471 = vpop.permute.xlu0 %470
        %v472 = vlaneseq
        %v473 = vshrl.u32 %v472, 7
        %v474 = vsub.s32 1, %v473
        %v475 = vrot.slane %v342, %v474
        %477 = vbcast.lane.b32.xlu0 %v475, 256
        %v478 = vpop.permute.xlu0 %477
        %s480 = sor.u32 256, 8
        %481 = vbcast.lane.b32.xlu0 %v475, %s480
        %v482 = vpop.permute.xlu0 %481
        %v483 = vlaneseq
        %v484 = vshrl.u32 %v483, 7
        %v485 = vsub.s32 2, %v484
        %v486 = vrot.slane %v342, %v485
        %488 = vbcast.lane.b32.xlu0 %v486, 256
        %v489 = vpop.permute.xlu0 %488
        %s491 = sor.u32 256, 8
        %492 = vbcast.lane.b32.xlu0 %v486, %s491
        %v493 = vpop.permute.xlu0 %492
        %v494 = vlaneseq
        %v495 = vshrl.u32 %v494, 7
        %v496 = vsub.s32 3, %v495
        %v497 = vrot.slane %v342, %v496
        %499 = vbcast.lane.b32.xlu0 %v497, 256
        %v500 = vpop.permute.xlu0 %499
        %s502 = sor.u32 256, 8
        %503 = vbcast.lane.b32.xlu0 %v497, %s502
        %v504 = vpop.permute.xlu0 %503
        %v505 = vlaneseq
        %v506 = vshrl.u32 %v505, 7
        %v507 = vsub.s32 4, %v506
        %v508 = vrot.slane %v342, %v507
        %510 = vbcast.lane.b32.xlu0 %v508, 256
        %v511 = vpop.permute.xlu0 %510
        %s513 = sor.u32 256, 8
        %514 = vbcast.lane.b32.xlu0 %v508, %s513
        %v515 = vpop.permute.xlu0 %514
        %v516 = vlaneseq
        %v517 = vshrl.u32 %v516, 7
        %v518 = vsub.s32 5, %v517
        %v519 = vrot.slane %v342, %v518
        %521 = vbcast.lane.b32.xlu0 %v519, 256
        %v522 = vpop.permute.xlu0 %521
        %s524 = sor.u32 256, 8
        %525 = vbcast.lane.b32.xlu0 %v519, %s524
        %v526 = vpop.permute.xlu0 %525
        %v527 = vlaneseq
        %v528 = vshrl.u32 %v527, 7
        %v529 = vsub.s32 6, %v528
        %v530 = vrot.slane %v342, %v529
        %532 = vbcast.lane.b32.xlu0 %v530, 256
        %v533 = vpop.permute.xlu0 %532
        %s535 = sor.u32 256, 8
        %536 = vbcast.lane.b32.xlu0 %v530, %s535
        %v537 = vpop.permute.xlu0 %536
        %v538 = vlaneseq
        %v539 = vshrl.u32 %v538, 7
        %v540 = vsub.s32 7, %v539
        %v541 = vrot.slane %v342, %v540
        %543 = vbcast.lane.b32.xlu0 %v541, 256
        %v544 = vpop.permute.xlu0 %543
        %s546 = sor.u32 256, 8
        %547 = vbcast.lane.b32.xlu0 %v541, %s546
        %v548 = vpop.permute.xlu0 %547
        %v549 = vmul.f32 %v379, %v343
        %v550 = vmul.f32 %v383, %v344
        %v551 = vmul.f32 %v390, %v343
        %v552 = vmul.f32 %v394, %v344
        %v553 = vmul.f32 %v401, %v343
        %v554 = vmul.f32 %v405, %v344
        %v555 = vmul.f32 %v412, %v343
        %v556 = vmul.f32 %v416, %v344
        %v557 = vmul.f32 %v423, %v343
        %v558 = vmul.f32 %v427, %v344
        %v559 = vmul.f32 %v434, %v343
        %v560 = vmul.f32 %v438, %v344
        %v561 = vmul.f32 %v445, %v343
        %v562 = vmul.f32 %v449, %v344
        %v563 = vmul.f32 %v456, %v343
        %v564 = vmul.f32 %v460, %v344
        %v565 = vmul.f32 %v467, %v343
        %v566 = vmul.f32 %v471, %v344
        %v567 = vmul.f32 %v478, %v343
        %v568 = vmul.f32 %v482, %v344
        %v569 = vmul.f32 %v489, %v343
        %v570 = vmul.f32 %v493, %v344
        %v571 = vmul.f32 %v500, %v343
        %v572 = vmul.f32 %v504, %v344
        %v573 = vmul.f32 %v511, %v343
        %v574 = vmul.f32 %v515, %v344
        %v575 = vmul.f32 %v522, %v343
        %v576 = vmul.f32 %v526, %v344
        %v577 = vmul.f32 %v533, %v343
        %v578 = vmul.f32 %v537, %v344
        %v579 = vmul.f32 %v544, %v343
        %v580 = vmul.f32 %v548, %v344
        %v581 = vadd.f32 %v549, %v550
        %v582 = vrot.slane %v581, 4
        %v583 = vadd.f32 %v581, %v582
        %v584 = vrot.slane %v583, 2
        %v585 = vadd.f32 %v583, %v584
        %v586 = vrot.slane %v585, 1
        %v587 = vadd.f32 %v585, %v586
        %v588 = vadd.f32 %v551, %v552
        %v589 = vrot.slane %v588, 4
        %v590 = vadd.f32 %v588, %v589
        %v591 = vrot.slane %v590, 2
        %v592 = vadd.f32 %v590, %v591
        %v593 = vrot.slane %v592, 1
        %v594 = vadd.f32 %v592, %v593
        %v595 = vadd.f32 %v553, %v554
        %v596 = vrot.slane %v595, 4
        %v597 = vadd.f32 %v595, %v596
        %v598 = vrot.slane %v597, 2
        %v599 = vadd.f32 %v597, %v598
        %v600 = vrot.slane %v599, 1
        %v601 = vadd.f32 %v599, %v600
        %v602 = vadd.f32 %v555, %v556
        %v603 = vrot.slane %v602, 4
        %v604 = vadd.f32 %v602, %v603
        %v605 = vrot.slane %v604, 2
        %v606 = vadd.f32 %v604, %v605
        %v607 = vrot.slane %v606, 1
        %v608 = vadd.f32 %v606, %v607
        %v609 = vadd.f32 %v557, %v558
        %v610 = vrot.slane %v609, 4
        %v611 = vadd.f32 %v609, %v610
        %v612 = vrot.slane %v611, 2
        %v613 = vadd.f32 %v611, %v612
        %v614 = vrot.slane %v613, 1
        %v615 = vadd.f32 %v613, %v614
        %v616 = vadd.f32 %v559, %v560
        %v617 = vrot.slane %v616, 4
        %v618 = vadd.f32 %v616, %v617
        %v619 = vrot.slane %v618, 2
        %v620 = vadd.f32 %v618, %v619
        %v621 = vrot.slane %v620, 1
        %v622 = vadd.f32 %v620, %v621
        %v623 = vadd.f32 %v561, %v562
        %v624 = vrot.slane %v623, 4
        %v625 = vadd.f32 %v623, %v624
        %v626 = vrot.slane %v625, 2
        %v627 = vadd.f32 %v625, %v626
        %v628 = vrot.slane %v627, 1
        %v629 = vadd.f32 %v627, %v628
        %v630 = vadd.f32 %v563, %v564
        %v631 = vrot.slane %v630, 4
        %v632 = vadd.f32 %v630, %v631
        %v633 = vrot.slane %v632, 2
        %v634 = vadd.f32 %v632, %v633
        %v635 = vrot.slane %v634, 1
        %v636 = vadd.f32 %v634, %v635
        %v637 = vadd.f32 %v565, %v566
        %v638 = vrot.slane %v637, 4
        %v639 = vadd.f32 %v637, %v638
        %v640 = vrot.slane %v639, 2
        %v641 = vadd.f32 %v639, %v640
        %v642 = vrot.slane %v641, 1
        %v643 = vadd.f32 %v641, %v642
        %v644 = vadd.f32 %v567, %v568
        %v645 = vrot.slane %v644, 4
        %v646 = vadd.f32 %v644, %v645
        %v647 = vrot.slane %v646, 2
        %v648 = vadd.f32 %v646, %v647
        %v649 = vrot.slane %v648, 1
        %v650 = vadd.f32 %v648, %v649
        %v651 = vadd.f32 %v569, %v570
        %v652 = vrot.slane %v651, 4
        %v653 = vadd.f32 %v651, %v652
        %v654 = vrot.slane %v653, 2
        %v655 = vadd.f32 %v653, %v654
        %v656 = vrot.slane %v655, 1
        %v657 = vadd.f32 %v655, %v656
        %v658 = vadd.f32 %v571, %v572
        %v659 = vrot.slane %v658, 4
        %v660 = vadd.f32 %v658, %v659
        %v661 = vrot.slane %v660, 2
        %v662 = vadd.f32 %v660, %v661
        %v663 = vrot.slane %v662, 1
        %v664 = vadd.f32 %v662, %v663
        %v665 = vadd.f32 %v573, %v574
        %v666 = vrot.slane %v665, 4
        %v667 = vadd.f32 %v665, %v666
        %v668 = vrot.slane %v667, 2
        %v669 = vadd.f32 %v667, %v668
        %v670 = vrot.slane %v669, 1
        %v671 = vadd.f32 %v669, %v670
        %v672 = vadd.f32 %v575, %v576
        %v673 = vrot.slane %v672, 4
        %v674 = vadd.f32 %v672, %v673
        %v675 = vrot.slane %v674, 2
        %v676 = vadd.f32 %v674, %v675
        %v677 = vrot.slane %v676, 1
        %v678 = vadd.f32 %v676, %v677
        %v679 = vadd.f32 %v577, %v578
        %v680 = vrot.slane %v679, 4
        %v681 = vadd.f32 %v679, %v680
        %v682 = vrot.slane %v681, 2
        %v683 = vadd.f32 %v681, %v682
        %v684 = vrot.slane %v683, 1
        %v685 = vadd.f32 %v683, %v684
        %v686 = vadd.f32 %v579, %v580
        %v687 = vrot.slane %v686, 4
        %v688 = vadd.f32 %v686, %v687
        %v689 = vrot.slane %v688, 2
        %v690 = vadd.f32 %v688, %v689
        %v691 = vrot.slane %v690, 1
        %v692 = vadd.f32 %v690, %v691
        %v695 = vrot.slane %v343, 1
        %v696 = vrot.slane %v343, 2
        %v697 = vrot.slane %v343, 3
        %v698 = vrot.slane %v343, 4
        %v699 = vrot.slane %v343, 5
        %v700 = vrot.slane %v343, 6
        %v701 = vrot.slane %v343, 7
        %v702 = vrot.slane %v344, 1
        %v703 = vrot.slane %v344, 2
        %v704 = vrot.slane %v344, 3
        %v705 = vrot.slane %v344, 4
        %v706 = vrot.slane %v344, 5
        %v707 = vrot.slane %v344, 6
        %v708 = vrot.slane %v344, 7
        %v725 = vadd.f32 %v587, %v343
        %v726 = vadd.f32 %v594, %v695
        %v727 = vadd.f32 %v601, %v696
        %v728 = vadd.f32 %v608, %v697
        %v729 = vadd.f32 %v615, %v698
        %v730 = vadd.f32 %v622, %v699
        %v731 = vadd.f32 %v629, %v700
        %v732 = vadd.f32 %v636, %v701
        %v733 = vadd.f32 %v643, %v344
        %v734 = vadd.f32 %v650, %v702
        %v735 = vadd.f32 %v657, %v703
        %v736 = vadd.f32 %v664, %v704
        %v737 = vadd.f32 %v671, %v705
        %v738 = vadd.f32 %v678, %v706
        %v739 = vadd.f32 %v685, %v707
        %v740 = vadd.f32 %v692, %v708
        %v742 = vlaneseq
        %v743 = vshrl.u32 %v742, 7
        %v744 = vsub.s32 0, %v743
        %v745 = vrot.slane %v372, %v744
        %v763 = vrot.slane %v726, 7
        %vm764 = vcmask 1041409
        %v765 = vsel %vm764, %v763, %v725
        %v766 = vrot.slane %v727, 6
        %vm767 = vcmask 1042434
        %v768 = vsel %vm767, %v766, %v765
        %v769 = vrot.slane %v728, 5
        %vm770 = vcmask 1043459
        %v771 = vsel %vm770, %v769, %v768
        %v772 = vrot.slane %v729, 4
        %vm773 = vcmask 1044484
        %v774 = vsel %vm773, %v772, %v771
        %v775 = vrot.slane %v730, 3
        %vm776 = vcmask 1045509
        %v777 = vsel %vm776, %v775, %v774
        %v778 = vrot.slane %v731, 2
        %vm779 = vcmask 1046534
        %v780 = vsel %vm779, %v778, %v777
        %v781 = vrot.slane %v732, 1
        %vm782 = vcmask 1047559
        %v783 = vsel %vm782, %v781, %v780
        %v784 = vrot.slane %v734, 7
        %v785 = vsel %vm764, %v784, %v733
        %v786 = vrot.slane %v735, 6
        %v787 = vsel %vm767, %v786, %v785
        %v788 = vrot.slane %v736, 5
        %v789 = vsel %vm770, %v788, %v787
        %v790 = vrot.slane %v737, 4
        %v791 = vsel %vm773, %v790, %v789
        %v792 = vrot.slane %v738, 3
        %v793 = vsel %vm776, %v792, %v791
        %v794 = vrot.slane %v739, 2
        %v795 = vsel %vm779, %v794, %v793
        %v796 = vrot.slane %v740, 1
        %v797 = vsel %vm782, %v796, %v795
        %800 = vmatprep.subr.mxu0 0.0
        %801 = vmatpush1.msra.mxu0 %v356
        %802 = vmatprep.subr.mxu0 0.0
        %803 = vmatpush1.msra.mxu0 %v357
        %804 = vmatprep.subr.mxu0 0.0
        %805 = vmatpush1.msra.mxu0 %v358
        %806 = vmatprep.subr.mxu0 0.0
        %807 = vmatpush1.msra.mxu0 %v359
        %808 = vmatprep.subr.mxu0 0.0
        %809 = vmatpush1.msra.mxu0 %v360
        %810 = vmatprep.subr.mxu0 0.0
        %811 = vmatpush1.msra.mxu0 %v361
        %812 = vmatprep.subr.mxu0 0.0
        %813 = vmatpush1.msra.mxu0 %v362
        %814 = vmatprep.subr.mxu0 0.0
        %815 = vmatpush1.msra.mxu0 %v363
        %816 = vmatprep.subr.mxu0 0.0
        %817 = vmatpush1.msra.mxu0 %v364
        %818 = vmatprep.subr.mxu0 0.0
        %819 = vmatpush1.msra.mxu0 %v365
        %820 = vmatprep.subr.mxu0 0.0
        %821 = vmatpush1.msra.mxu0 %v366
        %822 = vmatprep.subr.mxu0 0.0
        %823 = vmatpush1.msra.mxu0 %v367
        %824 = vmatprep.subr.mxu0 0.0
        %825 = vmatpush1.msra.mxu0 %v368
        %826 = vmatprep.subr.mxu0 0.0
        %827 = vmatpush1.msra.mxu0 %v369
        %828 = vmatprep.subr.mxu0 0.0
        %829 = vmatpush1.msra.mxu0 %v370
        %830 = vmatprep.subr.mxu0 0.0
        %831 = vmatpush1.msra.mxu0 %v371
        %832 = vmatprep.subr.mxu0 0.0
        %833 = vmatpush1.msra.mxu0 0.0
        %834 = vmatprep.subr.mxu0 0.0
        %835 = vmatpush1.msra.mxu0 0.0
        %836 = vmatprep.subr.mxu0 0.0
        %837 = vmatpush1.msra.mxu0 0.0
        %838 = vmatprep.subr.mxu0 0.0
        %839 = vmatpush1.msra.mxu0 0.0
        %840 = vmatprep.subr.mxu0 0.0
        %841 = vmatpush1.msra.mxu0 0.0
        %842 = vmatprep.subr.mxu0 0.0
        %843 = vmatpush1.msra.mxu0 0.0
        %844 = vmatprep.subr.mxu0 0.0
        %845 = vmatpush1.msra.mxu0 0.0
        %846 = vmatprep.subr.mxu0 0.0
        %847 = vmatpush1.msra.mxu0 0.0
        %848 = vmatprep.subr.mxu0 0.0
        %849 = vmatpush1.msra.mxu0 0.0
        %850 = vmatprep.subr.mxu0 0.0
        %851 = vmatpush1.msra.mxu0 0.0
        %852 = vmatprep.subr.mxu0 0.0
        %853 = vmatpush1.msra.mxu0 0.0
        %854 = vmatprep.subr.mxu0 0.0
        %855 = vmatpush1.msra.mxu0 0.0
        %856 = vmatprep.subr.mxu0 0.0
        %857 = vmatpush1.msra.mxu0 0.0
        %858 = vmatprep.subr.mxu0 0.0
        %859 = vmatpush1.msra.mxu0 0.0
        %860 = vmatprep.subr.mxu0 0.0
        %861 = vmatpush1.msra.mxu0 0.0
        %862 = vmatprep.subr.mxu0 0.0
        %863 = vmatpush1.msra.mxu0 0.0
        %864 = vmatprep.mubr.f32.mxu0 0.0
        %865 = vmatmul.mubr.f32.gmra.mrb[0].mxu0 %v783
        %v866 = vpop.f32.mrb[0].mxu0
        %v867 = vadd.f32 %v745, %v866
        %v868 = vpop.f32.mrb[0].mxu0
        %869 = vmatprep.mubr.f32.mxu0 0.0
        %870 = vmatmul.mubr.f32.gmra.mrb[0].mxu0 %v797
        %v871 = vpop.f32.mrb[0].mxu0
        %v872 = vadd.f32 %v745, %v871
        %v873 = vpop.f32.mrb[0].mxu0
        %874 = vdwg.mxu0
        %v875 = vmul.f32 %v867, %v354
        %v876 = vmul.f32 %v872, %v355
        %v877 = vmax.f32 %v875, 0.0
        %v878 = vmax.f32 %v876, 0.0
        %s879 = scalar_lea.vmem [#allocation7], 128
        %v880 = vld [vmem:[%s879] sm:$0xff]
        %v881 = vld [vmem:[%s879 + $0x8] sm:$0xff]
        %v882 = vld [vmem:[%s879 + $0x10] sm:$0xff]
        %v883 = vld [vmem:[%s879 + $0x18] sm:$0xff]
        %v884 = vld [vmem:[%s879 + $0x20] sm:$0xff]
        %v885 = vld [vmem:[%s879 + $0x28] sm:$0xff]
        %v886 = vld [vmem:[%s879 + $0x30] sm:$0xff]
        %v887 = vld [vmem:[%s879 + $0x38] sm:$0xff]
        %v888 = vld [vmem:[%s879 + $0x40] sm:$0xff]
        %v889 = vld [vmem:[%s879 + $0x48] sm:$0xff]
        %v890 = vld [vmem:[%s879 + $0x50] sm:$0xff]
        %v891 = vld [vmem:[%s879 + $0x58] sm:$0xff]
        %v892 = vld [vmem:[%s879 + $0x60] sm:$0xff]
        %v893 = vld [vmem:[%s879 + $0x68] sm:$0xff]
        %v894 = vld [vmem:[%s879 + $0x70] sm:$0xff]
        %v895 = vld [vmem:[%s879 + $0x78] sm:$0xff]
        %s896 = scalar_lea.vmem %s3, 1
        %v897 = vld [vmem:[%s896] sm:$0x1]
        %v898 = vmul.f32 %v379, %v877
        %v899 = vmul.f32 %v383, %v878
        %v900 = vmul.f32 %v390, %v877
        %v901 = vmul.f32 %v394, %v878
        %v902 = vmul.f32 %v401, %v877
        %v903 = vmul.f32 %v405, %v878
        %v904 = vmul.f32 %v412, %v877
        %v905 = vmul.f32 %v416, %v878
        %v906 = vmul.f32 %v423, %v877
        %v907 = vmul.f32 %v427, %v878
        %v908 = vmul.f32 %v434, %v877
        %v909 = vmul.f32 %v438, %v878
        %v910 = vmul.f32 %v445, %v877
        %v911 = vmul.f32 %v449, %v878
        %v912 = vmul.f32 %v456, %v877
        %v913 = vmul.f32 %v460, %v878
        %v914 = vmul.f32 %v467, %v877
        %v915 = vmul.f32 %v471, %v878
        %v916 = vmul.f32 %v478, %v877
        %v917 = vmul.f32 %v482, %v878
        %v918 = vmul.f32 %v489, %v877
        %v919 = vmul.f32 %v493, %v878
        %v920 = vmul.f32 %v500, %v877
        %v921 = vmul.f32 %v504, %v878
        %v922 = vmul.f32 %v511, %v877
        %v923 = vmul.f32 %v515, %v878
        %v924 = vmul.f32 %v522, %v877
        %v925 = vmul.f32 %v526, %v878
        %v926 = vmul.f32 %v533, %v877
        %v927 = vmul.f32 %v537, %v878
        %v928 = vmul.f32 %v544, %v877
        %v929 = vmul.f32 %v548, %v878
        %v930 = vadd.f32 %v898, %v899
        %v931 = vrot.slane %v930, 4
        %v932 = vadd.f32 %v930, %v931
        %v933 = vrot.slane %v932, 2
        %v934 = vadd.f32 %v932, %v933
        %v935 = vrot.slane %v934, 1
        %v936 = vadd.f32 %v934, %v935
        %v937 = vadd.f32 %v900, %v901
        %v938 = vrot.slane %v937, 4
        %v939 = vadd.f32 %v937, %v938
        %v940 = vrot.slane %v939, 2
        %v941 = vadd.f32 %v939, %v940
        %v942 = vrot.slane %v941, 1
        %v943 = vadd.f32 %v941, %v942
        %v944 = vadd.f32 %v902, %v903
        %v945 = vrot.slane %v944, 4
        %v946 = vadd.f32 %v944, %v945
        %v947 = vrot.slane %v946, 2
        %v948 = vadd.f32 %v946, %v947
        %v949 = vrot.slane %v948, 1
        %v950 = vadd.f32 %v948, %v949
        %v951 = vadd.f32 %v904, %v905
        %v952 = vrot.slane %v951, 4
        %v953 = vadd.f32 %v951, %v952
        %v954 = vrot.slane %v953, 2
        %v955 = vadd.f32 %v953, %v954
        %v956 = vrot.slane %v955, 1
        %v957 = vadd.f32 %v955, %v956
        %v958 = vadd.f32 %v906, %v907
        %v959 = vrot.slane %v958, 4
        %v960 = vadd.f32 %v958, %v959
        %v961 = vrot.slane %v960, 2
        %v962 = vadd.f32 %v960, %v961
        %v963 = vrot.slane %v962, 1
        %v964 = vadd.f32 %v962, %v963
        %v965 = vadd.f32 %v908, %v909
        %v966 = vrot.slane %v965, 4
        %v967 = vadd.f32 %v965, %v966
        %v968 = vrot.slane %v967, 2
        %v969 = vadd.f32 %v967, %v968
        %v970 = vrot.slane %v969, 1
        %v971 = vadd.f32 %v969, %v970
        %v972 = vadd.f32 %v910, %v911
        %v973 = vrot.slane %v972, 4
        %v974 = vadd.f32 %v972, %v973
        %v975 = vrot.slane %v974, 2
        %v976 = vadd.f32 %v974, %v975
        %v977 = vrot.slane %v976, 1
        %v978 = vadd.f32 %v976, %v977
        %v979 = vadd.f32 %v912, %v913
        %v980 = vrot.slane %v979, 4
        %v981 = vadd.f32 %v979, %v980
        %v982 = vrot.slane %v981, 2
        %v983 = vadd.f32 %v981, %v982
        %v984 = vrot.slane %v983, 1
        %v985 = vadd.f32 %v983, %v984
        %v986 = vadd.f32 %v914, %v915
        %v987 = vrot.slane %v986, 4
        %v988 = vadd.f32 %v986, %v987
        %v989 = vrot.slane %v988, 2
        %v990 = vadd.f32 %v988, %v989
        %v991 = vrot.slane %v990, 1
        %v992 = vadd.f32 %v990, %v991
        %v993 = vadd.f32 %v916, %v917
        %v994 = vrot.slane %v993, 4
        %v995 = vadd.f32 %v993, %v994
        %v996 = vrot.slane %v995, 2
        %v997 = vadd.f32 %v995, %v996
        %v998 = vrot.slane %v997, 1
        %v999 = vadd.f32 %v997, %v998
        %v1000 = vadd.f32 %v918, %v919
        %v1001 = vrot.slane %v1000, 4
        %v1002 = vadd.f32 %v1000, %v1001
        %v1003 = vrot.slane %v1002, 2
        %v1004 = vadd.f32 %v1002, %v1003
        %v1005 = vrot.slane %v1004, 1
        %v1006 = vadd.f32 %v1004, %v1005
        %v1007 = vadd.f32 %v920, %v921
        %v1008 = vrot.slane %v1007, 4
        %v1009 = vadd.f32 %v1007, %v1008
        %v1010 = vrot.slane %v1009, 2
        %v1011 = vadd.f32 %v1009, %v1010
        %v1012 = vrot.slane %v1011, 1
        %v1013 = vadd.f32 %v1011, %v1012
        %v1014 = vadd.f32 %v922, %v923
        %v1015 = vrot.slane %v1014, 4
        %v1016 = vadd.f32 %v1014, %v1015
        %v1017 = vrot.slane %v1016, 2
        %v1018 = vadd.f32 %v1016, %v1017
        %v1019 = vrot.slane %v1018, 1
        %v1020 = vadd.f32 %v1018, %v1019
        %v1021 = vadd.f32 %v924, %v925
        %v1022 = vrot.slane %v1021, 4
        %v1023 = vadd.f32 %v1021, %v1022
        %v1024 = vrot.slane %v1023, 2
        %v1025 = vadd.f32 %v1023, %v1024
        %v1026 = vrot.slane %v1025, 1
        %v1027 = vadd.f32 %v1025, %v1026
        %v1028 = vadd.f32 %v926, %v927
        %v1029 = vrot.slane %v1028, 4
        %v1030 = vadd.f32 %v1028, %v1029
        %v1031 = vrot.slane %v1030, 2
        %v1032 = vadd.f32 %v1030, %v1031
        %v1033 = vrot.slane %v1032, 1
        %v1034 = vadd.f32 %v1032, %v1033
        %v1035 = vadd.f32 %v928, %v929
        %v1036 = vrot.slane %v1035, 4
        %v1037 = vadd.f32 %v1035, %v1036
        %v1038 = vrot.slane %v1037, 2
        %v1039 = vadd.f32 %v1037, %v1038
        %v1040 = vrot.slane %v1039, 1
        %v1041 = vadd.f32 %v1039, %v1040
        %v1044 = vrot.slane %v877, 1
        %v1045 = vrot.slane %v877, 2
        %v1046 = vrot.slane %v877, 3
        %v1047 = vrot.slane %v877, 4
        %v1048 = vrot.slane %v877, 5
        %v1049 = vrot.slane %v877, 6
        %v1050 = vrot.slane %v877, 7
        %v1051 = vrot.slane %v878, 1
        %v1052 = vrot.slane %v878, 2
        %v1053 = vrot.slane %v878, 3
        %v1054 = vrot.slane %v878, 4
        %v1055 = vrot.slane %v878, 5
        %v1056 = vrot.slane %v878, 6
        %v1057 = vrot.slane %v878, 7
        %v1074 = vadd.f32 %v936, %v877
        %v1075 = vadd.f32 %v943, %v1044
        %v1076 = vadd.f32 %v950, %v1045
        %v1077 = vadd.f32 %v957, %v1046
        %v1078 = vadd.f32 %v964, %v1047
        %v1079 = vadd.f32 %v971, %v1048
        %v1080 = vadd.f32 %v978, %v1049
        %v1081 = vadd.f32 %v985, %v1050
        %v1082 = vadd.f32 %v992, %v878
        %v1083 = vadd.f32 %v999, %v1051
        %v1084 = vadd.f32 %v1006, %v1052
        %v1085 = vadd.f32 %v1013, %v1053
        %v1086 = vadd.f32 %v1020, %v1054
        %v1087 = vadd.f32 %v1027, %v1055
        %v1088 = vadd.f32 %v1034, %v1056
        %v1089 = vadd.f32 %v1041, %v1057
        %v1091 = vlaneseq
        %v1092 = vshrl.u32 %v1091, 7
        %v1093 = vsub.s32 0, %v1092
        %v1094 = vrot.slane %v897, %v1093
        %v1112 = vrot.slane %v1075, 7
        %v1113 = vsel %vm764, %v1112, %v1074
        %v1114 = vrot.slane %v1076, 6
        %v1115 = vsel %vm767, %v1114, %v1113
        %v1116 = vrot.slane %v1077, 5
        %v1117 = vsel %vm770, %v1116, %v1115
        %v1118 = vrot.slane %v1078, 4
        %v1119 = vsel %vm773, %v1118, %v1117
        %v1120 = vrot.slane %v1079, 3
        %v1121 = vsel %vm776, %v1120, %v1119
        %v1122 = vrot.slane %v1080, 2
        %v1123 = vsel %vm779, %v1122, %v1121
        %v1124 = vrot.slane %v1081, 1
        %v1125 = vsel %vm782, %v1124, %v1123
        %v1126 = vrot.slane %v1083, 7
        %v1127 = vsel %vm764, %v1126, %v1082
        %v1128 = vrot.slane %v1084, 6
        %v1129 = vsel %vm767, %v1128, %v1127
        %v1130 = vrot.slane %v1085, 5
        %v1131 = vsel %vm770, %v1130, %v1129
        %v1132 = vrot.slane %v1086, 4
        %v1133 = vsel %vm773, %v1132, %v1131
        %v1134 = vrot.slane %v1087, 3
        %v1135 = vsel %vm776, %v1134, %v1133
        %v1136 = vrot.slane %v1088, 2
        %v1137 = vsel %vm779, %v1136, %v1135
        %v1138 = vrot.slane %v1089, 1
        %v1139 = vsel %vm782, %v1138, %v1137
        %1142 = vmatprep.subr.mxu0 0.0
        %1143 = vmatpush1.msra.mxu0 %v880
        %1144 = vmatprep.subr.mxu0 0.0
        %1145 = vmatpush1.msra.mxu0 %v881
        %1146 = vmatprep.subr.mxu0 0.0
        %1147 = vmatpush1.msra.mxu0 %v882
        %1148 = vmatprep.subr.mxu0 0.0
        %1149 = vmatpush1.msra.mxu0 %v883
        %1150 = vmatprep.subr.mxu0 0.0
        %1151 = vmatpush1.msra.mxu0 %v884
        %1152 = vmatprep.subr.mxu0 0.0
        %1153 = vmatpush1.msra.mxu0 %v885
        %1154 = vmatprep.subr.mxu0 0.0
        %1155 = vmatpush1.msra.mxu0 %v886
        %1156 = vmatprep.subr.mxu0 0.0
        %1157 = vmatpush1.msra.mxu0 %v887
        %1158 = vmatprep.subr.mxu0 0.0
        %1159 = vmatpush1.msra.mxu0 %v888
        %1160 = vmatprep.subr.mxu0 0.0
        %1161 = vmatpush1.msra.mxu0 %v889
        %1162 = vmatprep.subr.mxu0 0.0
        %1163 = vmatpush1.msra.mxu0 %v890
        %1164 = vmatprep.subr.mxu0 0.0
        %1165 = vmatpush1.msra.mxu0 %v891
        %1166 = vmatprep.subr.mxu0 0.0
        %1167 = vmatpush1.msra.mxu0 %v892
        %1168 = vmatprep.subr.mxu0 0.0
        %1169 = vmatpush1.msra.mxu0 %v893
        %1170 = vmatprep.subr.mxu0 0.0
        %1171 = vmatpush1.msra.mxu0 %v894
        %1172 = vmatprep.subr.mxu0 0.0
        %1173 = vmatpush1.msra.mxu0 %v895
        %1174 = vmatprep.subr.mxu0 0.0
        %1175 = vmatpush1.msra.mxu0 0.0
        %1176 = vmatprep.subr.mxu0 0.0
        %1177 = vmatpush1.msra.mxu0 0.0
        %1178 = vmatprep.subr.mxu0 0.0
        %1179 = vmatpush1.msra.mxu0 0.0
        %1180 = vmatprep.subr.mxu0 0.0
        %1181 = vmatpush1.msra.mxu0 0.0
        %1182 = vmatprep.subr.mxu0 0.0
        %1183 = vmatpush1.msra.mxu0 0.0
        %1184 = vmatprep.subr.mxu0 0.0
        %1185 = vmatpush1.msra.mxu0 0.0
        %1186 = vmatprep.subr.mxu0 0.0
        %1187 = vmatpush1.msra.mxu0 0.0
        %1188 = vmatprep.subr.mxu0 0.0
        %1189 = vmatpush1.msra.mxu0 0.0
        %1190 = vmatprep.subr.mxu0 0.0
        %1191 = vmatpush1.msra.mxu0 0.0
        %1192 = vmatprep.subr.mxu0 0.0
        %1193 = vmatpush1.msra.mxu0 0.0
        %1194 = vmatprep.subr.mxu0 0.0
        %1195 = vmatpush1.msra.mxu0 0.0
        %1196 = vmatprep.subr.mxu0 0.0
        %1197 = vmatpush1.msra.mxu0 0.0
        %1198 = vmatprep.subr.mxu0 0.0
        %1199 = vmatpush1.msra.mxu0 0.0
        %1200 = vmatprep.subr.mxu0 0.0
        %1201 = vmatpush1.msra.mxu0 0.0
        %1202 = vmatprep.subr.mxu0 0.0
        %1203 = vmatpush1.msra.mxu0 0.0
        %1204 = vmatprep.subr.mxu0 0.0
        %1205 = vmatpush1.msra.mxu0 0.0
        %1206 = vmatprep.mubr.f32.mxu0 0.0
        %1207 = vmatmul.mubr.f32.gmra.mrb[0].mxu0 %v1125
        %v1208 = vpop.f32.mrb[0].mxu0
        %v1209 = vadd.f32 %v1094, %v1208
        %v1210 = vpop.f32.mrb[0].mxu0
        %1211 = vmatprep.mubr.f32.mxu0 0.0
        %1212 = vmatmul.mubr.f32.gmra.mrb[0].mxu0 %v1139
        %v1213 = vpop.f32.mrb[0].mxu0
        %v1214 = vadd.f32 %v1094, %v1213
        %v1215 = vpop.f32.mrb[0].mxu0
        %1216 = vdwg.mxu0
        %v1217 = vmul.f32 %v1209, %v354
        %v1218 = vmul.f32 %v1214, %v355
        %v1219 = vmax.f32 %v1217, 0.0
        %v1220 = vmax.f32 %v1218, 0.0
        %v1221 = vadd.f32 %v1219, %v343
        %v1222 = vadd.f32 %v1220, %v344
        %v1223 = vld [vmem:[#allocation8] sm:$0xff]
        %v1224 = vld [vmem:[#allocation8 + $0x8] sm:$0xff]
        %v1225 = vld [vmem:[#allocation8 + $0x10] sm:$0xff]
        %v1226 = vld [vmem:[#allocation8 + $0x18] sm:$0xff]
        %v1227 = vld [vmem:[#allocation8 + $0x20] sm:$0xff]
        %v1228 = vld [vmem:[#allocation8 + $0x28] sm:$0xff]
        %v1229 = vld [vmem:[#allocation8 + $0x30] sm:$0xff]
        %v1230 = vld [vmem:[#allocation8 + $0x38] sm:$0xff]
        %v1231 = vld [vmem:[#allocation8 + $0x40] sm:$0xff]
        %v1232 = vld [vmem:[#allocation8 + $0x48] sm:$0xff]
        %v1233 = vld [vmem:[#allocation8 + $0x50] sm:$0xff]
        %v1234 = vld [vmem:[#allocation8 + $0x58] sm:$0xff]
        %v1235 = vld [vmem:[#allocation8 + $0x60] sm:$0xff]
        %v1236 = vld [vmem:[#allocation8 + $0x68] sm:$0xff]
        %v1237 = vld [vmem:[#allocation8 + $0x70] sm:$0xff]
        %v1238 = vld [vmem:[#allocation8 + $0x78] sm:$0xff]
        %v1239 = vld [vmem:[%s5] sm:$0x1]
        %v1241 = vlaneseq
        %v1242 = vshrl.u32 %v1241, 7
        %v1243 = vsub.s32 0, %v1242
        %v1244 = vrot.slane %v1239, %v1243
        %1246 = vmatprep.subr.mxu0 0.0
        %1247 = vmatpush1.msra.mxu0 %v1223
        %1248 = vmatprep.subr.mxu0 0.0
        %1249 = vmatpush1.msra.mxu0 %v1224
        %1250 = vmatprep.subr.mxu0 0.0
        %1251 = vmatpush1.msra.mxu0 %v1225
        %1252 = vmatprep.subr.mxu0 0.0
        %1253 = vmatpush1.msra.mxu0 %v1226
        %1254 = vmatprep.subr.mxu0 0.0
        %1255 = vmatpush1.msra.mxu0 %v1227
        %1256 = vmatprep.subr.mxu0 0.0
        %1257 = vmatpush1.msra.mxu0 %v1228
        %1258 = vmatprep.subr.mxu0 0.0
        %1259 = vmatpush1.msra.mxu0 %v1229
        %1260 = vmatprep.subr.mxu0 0.0
        %1261 = vmatpush1.msra.mxu0 %v1230
        %1262 = vmatprep.subr.mxu0 0.0
        %1263 = vmatpush1.msra.mxu0 %v1231
        %1264 = vmatprep.subr.mxu0 0.0
        %1265 = vmatpush1.msra.mxu0 %v1232
        %1266 = vmatprep.subr.mxu0 0.0
        %1267 = vmatpush1.msra.mxu0 %v1233
        %1268 = vmatprep.subr.mxu0 0.0
        %1269 = vmatpush1.msra.mxu0 %v1234
        %1270 = vmatprep.subr.mxu0 0.0
        %1271 = vmatpush1.msra.mxu0 %v1235
        %1272 = vmatprep.subr.mxu0 0.0
        %1273 = vmatpush1.msra.mxu0 %v1236
        %1274 = vmatprep.subr.mxu0 0.0
        %1275 = vmatpush1.msra.mxu0 %v1237
        %1276 = vmatprep.subr.mxu0 0.0
        %1277 = vmatpush1.msra.mxu0 %v1238
        %1278 = vmatprep.subr.mxu0 0.0
        %1279 = vmatpush1.msra.mxu0 0.0
        %1280 = vmatprep.subr.mxu0 0.0
        %1281 = vmatpush1.msra.mxu0 0.0
        %1282 = vmatprep.subr.mxu0 0.0
        %1283 = vmatpush1.msra.mxu0 0.0
        %1284 = vmatprep.subr.mxu0 0.0
        %1285 = vmatpush1.msra.mxu0 0.0
        %1286 = vmatprep.subr.mxu0 0.0
        %1287 = vmatpush1.msra.mxu0 0.0
        %1288 = vmatprep.subr.mxu0 0.0
        %1289 = vmatpush1.msra.mxu0 0.0
        %1290 = vmatprep.subr.mxu0 0.0
        %1291 = vmatpush1.msra.mxu0 0.0
        %1292 = vmatprep.subr.mxu0 0.0
        %1293 = vmatpush1.msra.mxu0 0.0
        %1294 = vmatprep.subr.mxu0 0.0
        %1295 = vmatpush1.msra.mxu0 0.0
        %1296 = vmatprep.subr.mxu0 0.0
        %1297 = vmatpush1.msra.mxu0 0.0
        %1298 = vmatprep.subr.mxu0 0.0
        %1299 = vmatpush1.msra.mxu0 0.0
        %1300 = vmatprep.subr.mxu0 0.0
        %1301 = vmatpush1.msra.mxu0 0.0
        %1302 = vmatprep.subr.mxu0 0.0
        %1303 = vmatpush1.msra.mxu0 0.0
        %1304 = vmatprep.subr.mxu0 0.0
        %1305 = vmatpush1.msra.mxu0 0.0
        %1306 = vmatprep.subr.mxu0 0.0
        %1307 = vmatpush1.msra.mxu0 0.0
        %1308 = vmatprep.subr.mxu0 0.0
        %1309 = vmatpush1.msra.mxu0 0.0
        %1310 = vmatprep.mubr.f32.mxu0 0.0
        %1311 = vmatmul.mubr.f32.gmra.mrb[0].mxu0 %v1221
        %v1312 = vpop.f32.mrb[0].mxu0
        %v1313 = vadd.f32 %v1244, %v1312
        %v1314 = vpop.f32.mrb[0].mxu0
        %1315 = vmatprep.mubr.f32.mxu0 0.0
        %1316 = vmatmul.mubr.f32.gmra.mrb[0].mxu0 %v1222
        %v1317 = vpop.f32.mrb[0].mxu0
        %v1318 = vadd.f32 %v1244, %v1317
        %v1319 = vpop.f32.mrb[0].mxu0
        %1320 = vdwg.mxu0
        %1321 = vst [vmem:[%s338] sm:$0xff] %v1313
        %1322 = vst [vmem:[%s338 + $0x8] sm:$0xff] %v1318
        %s1323 = sand.u32 %s171, 1
        %s1324 = scalar_lea.sflag [#allocation4], %s1323
        %s1325 = sand.u32 %s171, 1
        %s1326 = smul.addr %s1325, 16
        %s1327 = scalar_lea.vmem [#allocation10], %s1326
        // Predicated region
        $region61: #{tpu_custom_call.1} parent=43 // pred_check
          %p1328 = pneg %p181
        $region62: #{tpu_custom_call.1} parent=43 // pred_check_branch
          %1330 = sbr.rel (%p1328) target = $region64
        $region63: #{tpu_custom_call.1} parent=43 // pred_region
          %s1332 = ssub.s32 256, 256
          %1333 = vsyncadd %s1324, %s1332
          %s1334 = smul.addr %s27, 2
          %s1335 = smul.addr %s1334, 128
          %s1336 = scalar_lea.hbm %s6, %s1335
          %s1337 = sshll.u32 %s1327, 4
          %s1338 = int_to_ptr.vmem [resolvable:$true] %s1337
          %1343 = dma.vmem_to_hbm [thread:$0]  %s1338, 256, %s1336, %s1324, 128, 128, 8
        $region64: #{tpu_custom_call.1} parent=43 // pred_fallthru
          _
      $region44: #{tpu_custom_call.1} parent=5 // pred_fallthru
        _
      %p1344 = scmp.le.s32.totalorder 2, %s22
      // Predicated region
      $region65: #{tpu_custom_call.1} parent=5 // pred_check
        %p1345 = pneg %p1344
      $region66: #{tpu_custom_call.1} parent=5 // pred_check_branch
        %1347 = sbr.rel (%p1345) target = $region68
      $region67: #{tpu_custom_call.1} parent=5 // pred_region
        %s1348 = ssub.s32 %s22, 2
        // Predicated region
        $region69: #{tpu_custom_call.1} parent=67 // pred_check
          %p1349 = pneg %p187
        $region70: #{tpu_custom_call.1} parent=67 // pred_check_branch
          %1351 = sbr.rel (%p1349) target = $region72
        $region71: #{tpu_custom_call.1} parent=67 // pred_region
          %s1352 = sand.u32 %s172, 1
          %s1353 = scalar_lea.sflag [#allocation4], %s1352
          %s1354 = sand.u32 %s172, 1
          %s1355 = smul.addr %s1354, 16
          %s1356 = scalar_lea.vmem [#allocation10], %s1355
          %1357 = dma.done %s1353, 256
        $region72: #{tpu_custom_call.1} parent=67 // pred_fallthru
          _
      $region68: #{tpu_custom_call.1} parent=5 // pred_fallthru
        _
    $region6: #{tpu_custom_call.1} parent=1 // loop_footer
      %s26 = sadd.s32 1, %s22
    $region7: #{tpu_custom_call.1} parent=1 // loop_footer_branch
      %21 = sbr.rel target = $region3
    $region8: #{tpu_custom_call.1} parent=1 // loop_exit
      _
    %1358 = vsyncpa [#allocation3], 1
    %s1359 = scalar_lea.sflag [#allocation3], 1
    %1360 = vsyncpa %s1359, 1
    %1361 = vsyncpa [#allocation6], 1
    %s1362 = scalar_lea.sflag [#allocation6], 1
    %1363 = vsyncpa %s1362, 1
    %1364 = vsyncpa [#allocation9], 1
    %1365 = vsyncpa [#allocation4], 1
    %s1366 = scalar_lea.sflag [#allocation4], 1
    %1367 = vsyncpa %s1366, 1

// kernel: tpu_custom_call.1
$region0: #{tpu_custom_call.1}
  #allocation0 [shape = 'u32[]', space=smem, size = 0x4, offset = 0x4, fixed_abs, tag = 'smem constant byte address 0x4 - core index']
  #allocation1 [shape = 'u32[144,128]{1,0:T(1,128)}', space=vmem, size = 0x12000, scoped, tag = 'internal scratch']
  %s0 = inlined_call_operand.hbm [shape: bf16[4,16,16], index: 0, kind: input, shape index: {}]
  %s1 = inlined_call_operand.hbm [shape: f32[4,16,128], index: 1, kind: input, shape index: {}]
  %s2 = inlined_call_operand.hbm [shape: f32[2,128,128], index: 2, kind: input, shape index: {}]
  %s3 = inlined_call_operand.vmem [shape: f32[2,1,128], index: 3, kind: input, shape index: {}]
  %s4 = inlined_call_operand.hbm [shape: f32[128,128], index: 4, kind: input, shape index: {}]
  %s5 = inlined_call_operand.vmem [shape: f32[1,128], index: 5, kind: input, shape index: {}]
  %s6 = inlined_call_operand.hbm [shape: f32[4,16,128], index: 6, kind: output, shape index: {}]
  %s7 = sld [smem:[#allocation0]]
  $region73: #{tpu_custom_call.1} parent=0
    _
  %s9 = ssub.s32 1, %s7
  %s10 = scalar_select 0, %s9, %s7
  $region1: #{tpu_custom_call.1} parent=0
    #allocation2 [shape = 'u8[8192]{0}', space=vmem, size = 0x2000, scoped, tag = 'input window, operand 0']
    #allocation3 [shape = 's32[2]{0}', space=sflag, size = 0x8, scoped, tag = 'scoped memory for tpu_custom_call.1']
    #allocation4 [shape = 's32[2]{0}', space=sflag, size = 0x8, scoped, tag = 'scoped memory for tpu_custom_call.1']
    #allocation5 [shape = 'u8[16384]{0}', space=vmem, size = 0x4000, scoped, tag = 'input window, operand 1']
    #allocation6 [shape = 's32[2]{0}', space=sflag, size = 0x8, scoped, tag = 'scoped memory for tpu_custom_call.1']
    #allocation7 [shape = 'u8[131072]{0}', space=vmem, size = 0x20000, scoped, tag = 'input window, operand 2, single buffered']
    #allocation8 [shape = 'u8[65536]{0}', space=vmem, size = 0x10000, scoped, tag = 'input window, operand 4, single buffered']
    #allocation9 [shape = 's32[1]{0}', space=sflag, size = 0x4, scoped, tag = 'scoped memory for tpu_custom_call.1']
    #allocation10 [shape = 'u8[16384]{0}', space=vmem, size = 0x4000, scoped, tag = 'output window, operand 0']
    %11 = vsyncpa [#allocation3], 0
    %s12 = scalar_lea.sflag [#allocation3], 1
    %13 = vsyncpa %s12, 0
    %14 = vsyncpa [#allocation6], 0
    %s15 = scalar_lea.sflag [#allocation6], 1
    %16 = vsyncpa %s15, 0
    %17 = vsyncpa [#allocation9], 0
    %18 = vsyncpa [#allocation4], 0
    %s19 = scalar_lea.sflag [#allocation4], 1
    %20 = vsyncpa %s19, 0
    loop: start=0, step=1, limit=6
    $region2: #{tpu_custom_call.1} parent=1 // loop_pre_header
      _
    $region3: #{tpu_custom_call.1} parent=1 // loop_header
      %s22 = sphi 0, %s26
      %p23 = scmp.ge.s32.totalorder %s22, 6
      %s32 = sphi 0, %s34
      %s35 = sphi 0, %s32
      %s36 = sphi 0, %s35
      %s52 = sphi 0, %s36
      %s58 = sphi 0, %s60
      %s61 = sphi 0, %s58
      %s62 = sphi 0, %s61
      %s78 = sphi 0, %s62
      %s82 = sphi 0, %s82
      %s84 = sphi 0, %s82
      %s85 = sphi 0, %s84
      %s99 = sphi 0, %s85
      %s103 = sphi 0, %s103
      %s105 = sphi 0, %s103
      %s106 = sphi 0, %s105
      %s120 = sphi 0, %s106
      %s124 = sphi 0, %s124
      %s126 = sphi 0, %s124
      %s127 = sphi 0, %s126
      %s141 = sphi 0, %s127
      %s145 = sphi 0, %s145
      %s147 = sphi 0, %s145
      %s148 = sphi 0, %s147
      %s162 = sphi 0, %s148
      %s168 = sphi 0, %s170
      %s171 = sphi 0, %s168
      %s172 = sphi 0, %s171
      %s188 = sphi 0, %s172
    $region4: #{tpu_custom_call.1} parent=1 // loop_header_branch
      %25 = sbr.rel (%p23) target = $region8
    $region5: #{tpu_custom_call.1} parent=1 // loop_body
      %s27 = ssub.s32 %s22, 1
      %s28 = ssub.s32 %s22, 2
      %s29 = sadd.s32 %s22, 1
      %s30 = ssub.s32 %s22, %s29
      %p31 = scmp.eq.s32.totalorder %s30, 0
      %s33 = sadd.s32 %s32, 1
      %s34 = scalar_select %p31, %s32, %s33
      %p37 = pneg %p31
      %p38 = scmp.eq.s32.totalorder %s22, 3
      %p39 = por %p37, %p38
      %p40 = scmp.ne.s32.totalorder %s32, %s35
      %p41 = scmp.eq.s32.totalorder %s22, 0
      %p42 = por %p40, %p41
      %p43 = scmp.ne.s32.totalorder %s32, %s35
      %p44 = scmp.eq.s32.totalorder %s27, 3
      %p45 = por %p43, %p44
      %p46 = scmp.ne.s32.totalorder %s35, %s36
      %p47 = scmp.eq.s32.totalorder %s27, 0
      %p48 = por %p46, %p47
      %p49 = scmp.ne.s32.totalorder %s35, %s36
      %p50 = scmp.eq.s32.totalorder %s28, 3
      %p51 = por %p49, %p50
      %p53 = scmp.ne.s32.totalorder %s36, %s52
      %p54 = scmp.eq.s32.totalorder %s28, 0
      %p55 = por %p53, %p54
      %s56 = ssub.s32 %s22, %s29
      %p57 = scmp.eq.s32.totalorder %s56, 0
      %s59 = sadd.s32 %s58, 1
      %s60 = scalar_select %p57, %s58, %s59
      %p63 = pneg %p57
      %p64 = scmp.eq.s32.totalorder %s22, 3
      %p65 = por %p63, %p64
      %p66 = scmp.ne.s32.totalorder %s58, %s61
      %p67 = scmp.eq.s32.totalorder %s22, 0
      %p68 = por %p66, %p67
      %p69 = scmp.ne.s32.totalorder %s58, %s61
      %p70 = scmp.eq.s32.totalorder %s27, 3
      %p71 = por %p69, %p70
      %p72 = scmp.ne.s32.totalorder %s61, %s62
      %p73 = scmp.eq.s32.totalorder %s27, 0
      %p74 = por %p72, %p73
      %p75 = scmp.ne.s32.totalorder %s61, %s62
      %p76 = scmp.eq.s32.totalorder %s28, 3
      %p77 = por %p75, %p76
      %p79 = scmp.ne.s32.totalorder %s62, %s78
      %p80 = scmp.eq.s32.totalorder %s28, 0
      %p81 = por %p79, %p80
      %s83 = sadd.s32 %s82, 1
      %p86 = scmp.eq.s32.totalorder %s22, 3
      %p87 = scmp.ne.s32.totalorder %s82, %s84
      %p88 = scmp.eq.s32.totalorder %s22, 0
      %p89 = por %p87, %p88
      %p90 = scmp.ne.s32.totalorder %s82, %s84
      %p91 = scmp.eq.s32.totalorder %s27, 3
      %p92 = por %p90, %p91
      %p93 = scmp.ne.s32.totalorder %s84, %s85
      %p94 = scmp.eq.s32.totalorder %s27, 0
      %p95 = por %p93, %p94
      %p96 = scmp.ne.s32.totalorder %s84, %s85
      %p97 = scmp.eq.s32.totalorder %s28, 3
      %p98 = por %p96, %p97
      %p100 = scmp.ne.s32.totalorder %s85, %s99
      %p101 = scmp.eq.s32.totalorder %s28, 0
      %p102 = por %p100, %p101
      %s104 = sadd.s32 %s103, 1
      %p107 = scmp.eq.s32.totalorder %s22, 3
      %p108 = scmp.ne.s32.totalorder %s103, %s105
      %p109 = scmp.eq.s32.totalorder %s22, 0
      %p110 = por %p108, %p109
      %p111 = scmp.ne.s32.totalorder %s103, %s105
      %p112 = scmp.eq.s32.totalorder %s27, 3
      %p113 = por %p111, %p112
      %p114 = scmp.ne.s32.totalorder %s105, %s106
      %p115 = scmp.eq.s32.totalorder %s27, 0
      %p116 = por %p114, %p115
      %p117 = scmp.ne.s32.totalorder %s105, %s106
      %p118 = scmp.eq.s32.totalorder %s28, 3
      %p119 = por %p117, %p118
      %p121 = scmp.ne.s32.totalorder %s106, %s120
      %p122 = scmp.eq.s32.totalorder %s28, 0
      %p123 = por %p121, %p122
      %s125 = sadd.s32 %s124, 1
      %p128 = scmp.eq.s32.totalorder %s22, 3
      %p129 = scmp.ne.s32.totalorder %s124, %s126
      %p130 = scmp.eq.s32.totalorder %s22, 0
      %p131 = por %p129, %p130
      %p132 = scmp.ne.s32.totalorder %s124, %s126
      %p133 = scmp.eq.s32.totalorder %s27, 3
      %p134 = por %p132, %p133
      %p135 = scmp.ne.s32.totalorder %s126, %s127
      %p136 = scmp.eq.s32.totalorder %s27, 0
      %p137 = por %p135, %p136
      %p138 = scmp.ne.s32.totalorder %s126, %s127
      %p139 = scmp.eq.s32.totalorder %s28, 3
      %p140 = por %p138, %p139
      %p142 = scmp.ne.s32.totalorder %s127, %s141
      %p143 = scmp.eq.s32.totalorder %s28, 0
      %p144 = por %p142, %p143
      %s146 = sadd.s32 %s145, 1
      %p149 = scmp.eq.s32.totalorder %s22, 3
      %p150 = scmp.ne.s32.totalorder %s145, %s147
      %p151 = scmp.eq.s32.totalorder %s22, 0
      %p152 = por %p150, %p151
      %p153 = scmp.ne.s32.totalorder %s145, %s147
      %p154 = scmp.eq.s32.totalorder %s27, 3
      %p155 = por %p153, %p154
      %p156 = scmp.ne.s32.totalorder %s147, %s148
      %p157 = scmp.eq.s32.totalorder %s27, 0
      %p158 = por %p156, %p157
      %p159 = scmp.ne.s32.totalorder %s147, %s148
      %p160 = scmp.eq.s32.totalorder %s28, 3
      %p161 = por %p159, %p160
      %p163 = scmp.ne.s32.totalorder %s148, %s162
      %p164 = scmp.eq.s32.totalorder %s28, 0
      %p165 = por %p163, %p164
      %s166 = ssub.s32 %s22, %s29
      %p167 = scmp.eq.s32.totalorder %s166, 0
      %s169 = sadd.s32 %s168, 1
      %s170 = scalar_select %p167, %s168, %s169
      %p173 = pneg %p167
      %p174 = scmp.eq.s32.totalorder %s22, 3
      %p175 = por %p173, %p174
      %p176 = scmp.ne.s32.totalorder %s168, %s171
      %p177 = scmp.eq.s32.totalorder %s22, 0
      %p178 = por %p176, %p177
      %p179 = scmp.ne.s32.totalorder %s168, %s171
      %p180 = scmp.eq.s32.totalorder %s27, 3
      %p181 = por %p179, %p180
      %p182 = scmp.ne.s32.totalorder %s171, %s172
      %p183 = scmp.eq.s32.totalorder %s27, 0
      %p184 = por %p182, %p183
      %p185 = scmp.ne.s32.totalorder %s171, %s172
      %p186 = scmp.eq.s32.totalorder %s28, 3
      %p187 = por %p185, %p186
      %p189 = scmp.ne.s32.totalorder %s172, %s188
      %p190 = scmp.eq.s32.totalorder %s28, 0
      %p191 = por %p189, %p190
      %p192 = scmp.le.s32.totalorder 1, %s22
      %p193 = scmp.lt.s32.totalorder %s22, 5
      %p194 = pnand %p192, %p193
      %p195 = pneg %p194
      // Predicated region
      $region9: #{tpu_custom_call.1} parent=5 // pred_check
        _
      $region10: #{tpu_custom_call.1} parent=5 // pred_check_branch
        %197 = sbr.rel (%p194) target = $region12
      $region11: #{tpu_custom_call.1} parent=5 // pred_region
        %s198 = ssub.s32 %s22, 1
        // Predicated region
        $region13: #{tpu_custom_call.1} parent=11 // pred_check
          %p199 = pneg %p95
        $region14: #{tpu_custom_call.1} parent=11 // pred_check_branch
          %201 = sbr.rel (%p199) target = $region16
        $region15: #{tpu_custom_call.1} parent=11 // pred_region
          %s203 = ssub.s32 4096, 4096
          %204 = vsyncadd [#allocation6], %s203
          %s205 = sshll.u32 [#allocation7], 4
          %s206 = int_to_ptr.vmem [resolvable:$true] %s205
          %211 = dma.hbm_to_vmem [thread:$0]  %s2, 4096, %s206, [#allocation6], 128, 128, 8
        $region16: #{tpu_custom_call.1} parent=11 // pred_fallthru
          _
        // Predicated region
        $region17: #{tpu_custom_call.1} parent=11 // pred_check
          %p212 = pneg %p116
        $region18: #{tpu_custom_call.1} parent=11 // pred_check_branch
          %214 = sbr.rel (%p212) target = $region20
        $region19: #{tpu_custom_call.1} parent=11 // pred_region
          _
        $region20: #{tpu_custom_call.1} parent=11 // pred_fallthru
          _
        // Predicated region
        $region21: #{tpu_custom_call.1} parent=11 // pred_check
          %p215 = pneg %p137
        $region22: #{tpu_custom_call.1} parent=11 // pred_check_branch
          %217 = sbr.rel (%p215) target = $region24
        $region23: #{tpu_custom_call.1} parent=11 // pred_region
          %s219 = ssub.s32 2048, 2048
          %220 = vsyncadd [#allocation9], %s219
          %s221 = sshll.u32 [#allocation8], 4
          %s222 = int_to_ptr.vmem [resolvable:$true] %s221
          %227 = dma.hbm_to_vmem [thread:$0]  %s4, 2048, %s222, [#allocation9], 128, 128, 8
        $region24: #{tpu_custom_call.1} parent=11 // pred_fallthru
          _
        // Predicated region
        $region25: #{tpu_custom_call.1} parent=11 // pred_check
          %p228 = pneg %p158
        $region26: #{tpu_custom_call.1} parent=11 // pred_check_branch
          %230 = sbr.rel (%p228) target = $region28
        $region27: #{tpu_custom_call.1} parent=11 // pred_region
          _
        $region28: #{tpu_custom_call.1} parent=11 // pred_fallthru
          _
      $region12: #{tpu_custom_call.1} parent=5 // pred_fallthru
        _
      %p231 = scmp.lt.s32.totalorder %s22, 4
      // Predicated region
      $region29: #{tpu_custom_call.1} parent=5 // pred_check
        %p232 = pneg %p231
      $region30: #{tpu_custom_call.1} parent=5 // pred_check_branch
        %234 = sbr.rel (%p232) target = $region32
      $region31: #{tpu_custom_call.1} parent=5 // pred_region
        // Predicated region
        $region33: #{tpu_custom_call.1} parent=31 // pred_check
          %p235 = pneg %p42
        $region34: #{tpu_custom_call.1} parent=31 // pred_check_branch
          %237 = sbr.rel (%p235) target = $region36
        $region35: #{tpu_custom_call.1} parent=31 // pred_region
          %s238 = sand.u32 %s32, 1
          %s239 = scalar_lea.sflag [#allocation3], %s238
          %s240 = sand.u32 %s32, 1
          %s241 = smul.addr %s240, 8
          %s242 = scalar_lea.vmem [#allocation2], %s241
          %s244 = ssub.s32 128, 128
          %245 = vsyncadd %s239, %s244
          %s246 = smul.addr %s22, 2
          %s247 = smul.addr %s246, 64
          %s248 = scalar_lea.hbm %s0, %s247
          %s249 = sshll.u32 %s242, 4
          %s250 = int_to_ptr.vmem [resolvable:$true] %s249
          %255 = dma.hbm_to_vmem [thread:$0]  %s248, 128, %s250, %s239, 64, 64, 4
        $region36: #{tpu_custom_call.1} parent=31 // pred_fallthru
          _
        // Predicated region
        $region37: #{tpu_custom_call.1} parent=31 // pred_check
          %p256 = pneg %p68
        $region38: #{tpu_custom_call.1} parent=31 // pred_check_branch
          %258 = sbr.rel (%p256) target = $region40
        $region39: #{tpu_custom_call.1} parent=31 // pred_region
          %s259 = sand.u32 %s22, 1
          %s260 = scalar_lea.sflag [#allocation6], %s259
          %s261 = sand.u32 %s58, 1
          %s262 = smul.addr %s261, 16
          %s263 = scalar_lea.vmem [#allocation5], %s262
          %s265 = ssub.s32 256, 256
          %266 = vsyncadd %s260, %s265
          %s267 = smul.addr %s22, 2
          %s268 = smul.addr %s267, 128
          %s269 = scalar_lea.hbm %s1, %s268
          %s270 = sshll.u32 %s263, 4
          %s271 = int_to_ptr.vmem [resolvable:$true] %s270
          %276 = dma.hbm_to_vmem [thread:$0]  %s269, 256, %s271, %s260, 128, 128, 8
        $region40: #{tpu_custom_call.1} parent=31 // pred_fallthru
          _
      $region32: #{tpu_custom_call.1} parent=5 // pred_fallthru
        _
      %p277 = scmp.le.s32.totalorder 1, %s22
      %p278 = scmp.lt.s32.totalorder %s22, 5
      %p279 = pnand %p277, %p278
      %p280 = pneg %p279
      // Predicated region
      $region41: #{tpu_custom_call.1} parent=5 // pred_check
        _
      $region42: #{tpu_custom_call.1} parent=5 // pred_check_branch
        %282 = sbr.rel (%p279) target = $region44
      $region43: #{tpu_custom_call.1} parent=5 // pred_region
        %s283 = ssub.s32 %s22, 1
        %s284 = sand.u32 %s35, 1
        %s285 = scalar_lea.sflag [#allocation3], %s284
        %s286 = sand.u32 %s35, 1
        %s287 = smul.addr %s286, 8
        %s288 = scalar_lea.vmem [#allocation2], %s287
        // Predicated region
        $region45: #{tpu_custom_call.1} parent=43 // pred_check
          %p289 = pneg %p48
        $region46: #{tpu_custom_call.1} parent=43 // pred_check_branch
          %291 = sbr.rel (%p289) target = $region48
        $region47: #{tpu_custom_call.1} parent=43 // pred_region
          %292 = dma.done %s285, 128
        $region48: #{tpu_custom_call.1} parent=43 // pred_fallthru
          _
        %s293 = sand.u32 %s27, 1
        %s294 = scalar_lea.sflag [#allocation6], %s293
        %s295 = sand.u32 %s61, 1
        %s296 = smul.addr %s295, 16
        %s297 = scalar_lea.vmem [#allocation5], %s296
        // Predicated region
        $region49: #{tpu_custom_call.1} parent=43 // pred_check
          %p298 = pneg %p74
        $region50: #{tpu_custom_call.1} parent=43 // pred_check_branch
          %300 = sbr.rel (%p298) target = $region52
        $region51: #{tpu_custom_call.1} parent=43 // pred_region
          %301 = dma.done %s294, 256
        $region52: #{tpu_custom_call.1} parent=43 // pred_fallthru
          _
        // Predicated region
        $region53: #{tpu_custom_call.1} parent=43 // pred_check
          %p302 = pneg %p95
        $region54: #{tpu_custom_call.1} parent=43 // pred_check_branch
          %304 = sbr.rel (%p302) target = $region56
        $region55: #{tpu_custom_call.1} parent=43 // pred_region
          %305 = dma.done [#allocation6], 4096
        $region56: #{tpu_custom_call.1} parent=43 // pred_fallthru
          _
        // Predicated region
        $region57: #{tpu_custom_call.1} parent=43 // pred_check
          %p306 = pneg %p137
        $region58: #{tpu_custom_call.1} parent=43 // pred_check_branch
          %308 = sbr.rel (%p306) target = $region60
        $region59: #{tpu_custom_call.1} parent=43 // pred_region
          %309 = dma.done [#allocation9], 2048
        $region60: #{tpu_custom_call.1} parent=43 // pred_fallthru
          _
        %s310 = sand.u32 %s35, 1
        %s311 = scalar_lea.sflag [#allocation3], %s310
        %s312 = sand.u32 %s35, 1
        %s313 = smul.addr %s312, 8
        %s314 = scalar_lea.vmem [#allocation2], %s313
        %p315 = pneg %p48
        %p316 = pneg %p45
        %s317 = sand.u32 %s27, 1
        %s318 = scalar_lea.sflag [#allocation6], %s317
        %s319 = sand.u32 %s61, 1
        %s320 = smul.addr %s319, 16
        %s321 = scalar_lea.vmem [#allocation5], %s320
        %p322 = pneg %p74
        %p323 = pneg %p71
        %p324 = pneg %p95
        %p325 = pneg %p92
        %p326 = pneg %p116
        %p327 = pneg %p113
        %p328 = pneg %p137
        %p329 = pneg %p134
        %p330 = pneg %p158
        %p331 = pneg %p155
        %p332 = pneg %p184
        %p333 = pneg %p181
        %s334 = sand.u32 %s171, 1
        %s335 = scalar_lea.sflag [#allocation4], %s334
        %s336 = sand.u32 %s171, 1
        %s337 = smul.addr %s336, 16
        %s338 = scalar_lea.vmem [#allocation10], %s337
        %v339 = vld [vmem:[%s288] sm:$0xf]
        %v340 = vld [vmem:[%s288 + $0x4] sm:$0xf]
        %v341 = vunpack.c.l.bf16 %v339
        %v342 = vunpack.c.l.bf16 %v340
        %v343 = vld [vmem:[%s297] sm:$0xff]
        %v344 = vld [vmem:[%s297 + $0x8] sm:$0xff]
        %vm345 = vcmask 130048
        %v346 = vsel %vm345, %v341, 0.0
        %347 = vadd.xlane.f32.xlu0 %v346
        %v348 = vpop.xlane.xlu0 %347
        %v349 = vsel %vm345, %v342, 0.0
        %350 = vadd.xlane.f32.xlu0 %v349
        %v351 = vpop.xlane.xlu0 %350
        %v352 = vadd.f32 %v348, 1.0
        %v353 = vadd.f32 %v351, 1.0
        %v354 = vrcp.pop %v352
        %v355 = vrcp.pop %v353
        %v356 = vld [vmem:[#allocation7] sm:$0xff]
        %v357 = vld [vmem:[#allocation7 + $0x8] sm:$0xff]
        %v358 = vld [vmem:[#allocation7 + $0x10] sm:$0xff]
        %v359 = vld [vmem:[#allocation7 + $0x18] sm:$0xff]
        %v360 = vld [vmem:[#allocation7 + $0x20] sm:$0xff]
        %v361 = vld [vmem:[#allocation7 + $0x28] sm:$0xff]
        %v362 = vld [vmem:[#allocation7 + $0x30] sm:$0xff]
        %v363 = vld [vmem:[#allocation7 + $0x38] sm:$0xff]
        %v364 = vld [vmem:[#allocation7 + $0x40] sm:$0xff]
        %v365 = vld [vmem:[#allocation7 + $0x48] sm:$0xff]
        %v366 = vld [vmem:[#allocation7 + $0x50] sm:$0xff]
        %v367 = vld [vmem:[#allocation7 + $0x58] sm:$0xff]
        %v368 = vld [vmem:[#allocation7 + $0x60] sm:$0xff]
        %v369 = vld [vmem:[#allocation7 + $0x68] sm:$0xff]
        %v370 = vld [vmem:[#allocation7 + $0x70] sm:$0xff]
        %v371 = vld [vmem:[#allocation7 + $0x78] sm:$0xff]
        %v372 = vld [vmem:[%s3] sm:$0x1]
        %v373 = vlaneseq
        %v374 = vshrl.u32 %v373, 7
        %v375 = vsub.s32 0, %v374
        %v376 = vrot.slane %v341, %v375
        %378 = vbcast.lane.b32.xlu0 %v376, 256
        %v379 = vpop.permute.xlu0 %378
        %s381 = sor.u32 256, 8
        %382 = vbcast.lane.b32.xlu0 %v376, %s381
        %v383 = vpop.permute.xlu0 %382
        %v384 = vlaneseq
        %v385 = vshrl.u32 %v384, 7
        %v386 = vsub.s32 1, %v385
        %v387 = vrot.slane %v341, %v386
        %389 = vbcast.lane.b32.xlu0 %v387, 256
        %v390 = vpop.permute.xlu0 %389
        %s392 = sor.u32 256, 8
        %393 = vbcast.lane.b32.xlu0 %v387, %s392
        %v394 = vpop.permute.xlu0 %393
        %v395 = vlaneseq
        %v396 = vshrl.u32 %v395, 7
        %v397 = vsub.s32 2, %v396
        %v398 = vrot.slane %v341, %v397
        %400 = vbcast.lane.b32.xlu0 %v398, 256
        %v401 = vpop.permute.xlu0 %400
        %s403 = sor.u32 256, 8
        %404 = vbcast.lane.b32.xlu0 %v398, %s403
        %v405 = vpop.permute.xlu0 %404
        %v406 = vlaneseq
        %v407 = vshrl.u32 %v406, 7
        %v408 = vsub.s32 3, %v407
        %v409 = vrot.slane %v341, %v408
        %411 = vbcast.lane.b32.xlu0 %v409, 256
        %v412 = vpop.permute.xlu0 %411
        %s414 = sor.u32 256, 8
        %415 = vbcast.lane.b32.xlu0 %v409, %s414
        %v416 = vpop.permute.xlu0 %415
        %v417 = vlaneseq
        %v418 = vshrl.u32 %v417, 7
        %v419 = vsub.s32 4, %v418
        %v420 = vrot.slane %v341, %v419
        %422 = vbcast.lane.b32.xlu0 %v420, 256
        %v423 = vpop.permute.xlu0 %422
        %s425 = sor.u32 256, 8
        %426 = vbcast.lane.b32.xlu0 %v420, %s425
        %v427 = vpop.permute.xlu0 %426
        %v428 = vlaneseq
        %v429 = vshrl.u32 %v428, 7
        %v430 = vsub.s32 5, %v429
        %v431 = vrot.slane %v341, %v430
        %433 = vbcast.lane.b32.xlu0 %v431, 256
        %v434 = vpop.permute.xlu0 %433
        %s436 = sor.u32 256, 8
        %437 = vbcast.lane.b32.xlu0 %v431, %s436
        %v438 = vpop.permute.xlu0 %437
        %v439 = vlaneseq
        %v440 = vshrl.u32 %v439, 7
        %v441 = vsub.s32 6, %v440
        %v442 = vrot.slane %v341, %v441
        %444 = vbcast.lane.b32.xlu0 %v442, 256
        %v445 = vpop.permute.xlu0 %444
        %s447 = sor.u32 256, 8
        %448 = vbcast.lane.b32.xlu0 %v442, %s447
        %v449 = vpop.permute.xlu0 %448
        %v450 = vlaneseq
        %v451 = vshrl.u32 %v450, 7
        %v452 = vsub.s32 7, %v451
        %v453 = vrot.slane %v341, %v452
        %455 = vbcast.lane.b32.xlu0 %v453, 256
        %v456 = vpop.permute.xlu0 %455
        %s458 = sor.u32 256, 8
        %459 = vbcast.lane.b32.xlu0 %v453, %s458
        %v460 = vpop.permute.xlu0 %459
        %v461 = vlaneseq
        %v462 = vshrl.u32 %v461, 7
        %v463 = vsub.s32 0, %v462
        %v464 = vrot.slane %v342, %v463
        %466 = vbcast.lane.b32.xlu0 %v464, 256
        %v467 = vpop.permute.xlu0 %466
        %s469 = sor.u32 256, 8
        %470 = vbcast.lane.b32.xlu0 %v464, %s469
        %v471 = vpop.permute.xlu0 %470
        %v472 = vlaneseq
        %v473 = vshrl.u32 %v472, 7
        %v474 = vsub.s32 1, %v473
        %v475 = vrot.slane %v342, %v474
        %477 = vbcast.lane.b32.xlu0 %v475, 256
        %v478 = vpop.permute.xlu0 %477
        %s480 = sor.u32 256, 8
        %481 = vbcast.lane.b32.xlu0 %v475, %s480
        %v482 = vpop.permute.xlu0 %481
        %v483 = vlaneseq
        %v484 = vshrl.u32 %v483, 7
        %v485 = vsub.s32 2, %v484
        %v486 = vrot.slane %v342, %v485
        %488 = vbcast.lane.b32.xlu0 %v486, 256
        %v489 = vpop.permute.xlu0 %488
        %s491 = sor.u32 256, 8
        %492 = vbcast.lane.b32.xlu0 %v486, %s491
        %v493 = vpop.permute.xlu0 %492
        %v494 = vlaneseq
        %v495 = vshrl.u32 %v494, 7
        %v496 = vsub.s32 3, %v495
        %v497 = vrot.slane %v342, %v496
        %499 = vbcast.lane.b32.xlu0 %v497, 256
        %v500 = vpop.permute.xlu0 %499
        %s502 = sor.u32 256, 8
        %503 = vbcast.lane.b32.xlu0 %v497, %s502
        %v504 = vpop.permute.xlu0 %503
        %v505 = vlaneseq
        %v506 = vshrl.u32 %v505, 7
        %v507 = vsub.s32 4, %v506
        %v508 = vrot.slane %v342, %v507
        %510 = vbcast.lane.b32.xlu0 %v508, 256
        %v511 = vpop.permute.xlu0 %510
        %s513 = sor.u32 256, 8
        %514 = vbcast.lane.b32.xlu0 %v508, %s513
        %v515 = vpop.permute.xlu0 %514
        %v516 = vlaneseq
        %v517 = vshrl.u32 %v516, 7
        %v518 = vsub.s32 5, %v517
        %v519 = vrot.slane %v342, %v518
        %521 = vbcast.lane.b32.xlu0 %v519, 256
        %v522 = vpop.permute.xlu0 %521
        %s524 = sor.u32 256, 8
        %525 = vbcast.lane.b32.xlu0 %v519, %s524
        %v526 = vpop.permute.xlu0 %525
        %v527 = vlaneseq
        %v528 = vshrl.u32 %v527, 7
        %v529 = vsub.s32 6, %v528
        %v530 = vrot.slane %v342, %v529
        %532 = vbcast.lane.b32.xlu0 %v530, 256
        %v533 = vpop.permute.xlu0 %532
        %s535 = sor.u32 256, 8
        %536 = vbcast.lane.b32.xlu0 %v530, %s535
        %v537 = vpop.permute.xlu0 %536
        %v538 = vlaneseq
        %v539 = vshrl.u32 %v538, 7
        %v540 = vsub.s32 7, %v539
        %v541 = vrot.slane %v342, %v540
        %543 = vbcast.lane.b32.xlu0 %v541, 256
        %v544 = vpop.permute.xlu0 %543
        %s546 = sor.u32 256, 8
        %547 = vbcast.lane.b32.xlu0 %v541, %s546
        %v548 = vpop.permute.xlu0 %547
        %v549 = vmul.f32 %v379, %v343
        %v550 = vmul.f32 %v383, %v344
        %v551 = vmul.f32 %v390, %v343
        %v552 = vmul.f32 %v394, %v344
        %v553 = vmul.f32 %v401, %v343
        %v554 = vmul.f32 %v405, %v344
        %v555 = vmul.f32 %v412, %v343
        %v556 = vmul.f32 %v416, %v344
        %v557 = vmul.f32 %v423, %v343
        %v558 = vmul.f32 %v427, %v344
        %v559 = vmul.f32 %v434, %v343
        %v560 = vmul.f32 %v438, %v344
        %v561 = vmul.f32 %v445, %v343
        %v562 = vmul.f32 %v449, %v344
        %v563 = vmul.f32 %v456, %v343
        %v564 = vmul.f32 %v460, %v344
        %v565 = vmul.f32 %v467, %v343
        %v566 = vmul.f32 %v471, %v344
        %v567 = vmul.f32 %v478, %v343
        %v568 = vmul.f32 %v482, %v344
        %v569 = vmul.f32 %v489, %v343
        %v570 = vmul.f32 %v493, %v344
        %v571 = vmul.f32 %v500, %v343
        %v572 = vmul.f32 %v504, %v344
        %v573 = vmul.f32 %v511, %v343
        %v574 = vmul.f32 %v515, %v344
        %v575 = vmul.f32 %v522, %v343
        %v576 = vmul.f32 %v526, %v344
        %v577 = vmul.f32 %v533, %v343
        %v578 = vmul.f32 %v537, %v344
        %v579 = vmul.f32 %v544, %v343
        %v580 = vmul.f32 %v548, %v344
        %v581 = vadd.f32 %v549, %v550
        %v582 = vrot.slane %v581, 4
        %v583 = vadd.f32 %v581, %v582
        %v584 = vrot.slane %v583, 2
        %v585 = vadd.f32 %v583, %v584
        %v586 = vrot.slane %v585, 1
        %v587 = vadd.f32 %v585, %v586
        %v588 = vadd.f32 %v551, %v552
        %v589 = vrot.slane %v588, 4
        %v590 = vadd.f32 %v588, %v589
        %v591 = vrot.slane %v590, 2
        %v592 = vadd.f32 %v590, %v591
        %v593 = vrot.slane %v592, 1
        %v594 = vadd.f32 %v592, %v593
        %v595 = vadd.f32 %v553, %v554
        %v596 = vrot.slane %v595, 4
        %v597 = vadd.f32 %v595, %v596
        %v598 = vrot.slane %v597, 2
        %v599 = vadd.f32 %v597, %v598
        %v600 = vrot.slane %v599, 1
        %v601 = vadd.f32 %v599, %v600
        %v602 = vadd.f32 %v555, %v556
        %v603 = vrot.slane %v602, 4
        %v604 = vadd.f32 %v602, %v603
        %v605 = vrot.slane %v604, 2
        %v606 = vadd.f32 %v604, %v605
        %v607 = vrot.slane %v606, 1
        %v608 = vadd.f32 %v606, %v607
        %v609 = vadd.f32 %v557, %v558
        %v610 = vrot.slane %v609, 4
        %v611 = vadd.f32 %v609, %v610
        %v612 = vrot.slane %v611, 2
        %v613 = vadd.f32 %v611, %v612
        %v614 = vrot.slane %v613, 1
        %v615 = vadd.f32 %v613, %v614
        %v616 = vadd.f32 %v559, %v560
        %v617 = vrot.slane %v616, 4
        %v618 = vadd.f32 %v616, %v617
        %v619 = vrot.slane %v618, 2
        %v620 = vadd.f32 %v618, %v619
        %v621 = vrot.slane %v620, 1
        %v622 = vadd.f32 %v620, %v621
        %v623 = vadd.f32 %v561, %v562
        %v624 = vrot.slane %v623, 4
        %v625 = vadd.f32 %v623, %v624
        %v626 = vrot.slane %v625, 2
        %v627 = vadd.f32 %v625, %v626
        %v628 = vrot.slane %v627, 1
        %v629 = vadd.f32 %v627, %v628
        %v630 = vadd.f32 %v563, %v564
        %v631 = vrot.slane %v630, 4
        %v632 = vadd.f32 %v630, %v631
        %v633 = vrot.slane %v632, 2
        %v634 = vadd.f32 %v632, %v633
        %v635 = vrot.slane %v634, 1
        %v636 = vadd.f32 %v634, %v635
        %v637 = vadd.f32 %v565, %v566
        %v638 = vrot.slane %v637, 4
        %v639 = vadd.f32 %v637, %v638
        %v640 = vrot.slane %v639, 2
        %v641 = vadd.f32 %v639, %v640
        %v642 = vrot.slane %v641, 1
        %v643 = vadd.f32 %v641, %v642
        %v644 = vadd.f32 %v567, %v568
        %v645 = vrot.slane %v644, 4
        %v646 = vadd.f32 %v644, %v645
        %v647 = vrot.slane %v646, 2
        %v648 = vadd.f32 %v646, %v647
        %v649 = vrot.slane %v648, 1
        %v650 = vadd.f32 %v648, %v649
        %v651 = vadd.f32 %v569, %v570
        %v652 = vrot.slane %v651, 4
        %v653 = vadd.f32 %v651, %v652
        %v654 = vrot.slane %v653, 2
        %v655 = vadd.f32 %v653, %v654
        %v656 = vrot.slane %v655, 1
        %v657 = vadd.f32 %v655, %v656
        %v658 = vadd.f32 %v571, %v572
        %v659 = vrot.slane %v658, 4
        %v660 = vadd.f32 %v658, %v659
        %v661 = vrot.slane %v660, 2
        %v662 = vadd.f32 %v660, %v661
        %v663 = vrot.slane %v662, 1
        %v664 = vadd.f32 %v662, %v663
        %v665 = vadd.f32 %v573, %v574
        %v666 = vrot.slane %v665, 4
        %v667 = vadd.f32 %v665, %v666
        %v668 = vrot.slane %v667, 2
        %v669 = vadd.f32 %v667, %v668
        %v670 = vrot.slane %v669, 1
        %v671 = vadd.f32 %v669, %v670
        %v672 = vadd.f32 %v575, %v576
        %v673 = vrot.slane %v672, 4
        %v674 = vadd.f32 %v672, %v673
        %v675 = vrot.slane %v674, 2
        %v676 = vadd.f32 %v674, %v675
        %v677 = vrot.slane %v676, 1
        %v678 = vadd.f32 %v676, %v677
        %v679 = vadd.f32 %v577, %v578
        %v680 = vrot.slane %v679, 4
        %v681 = vadd.f32 %v679, %v680
        %v682 = vrot.slane %v681, 2
        %v683 = vadd.f32 %v681, %v682
        %v684 = vrot.slane %v683, 1
        %v685 = vadd.f32 %v683, %v684
        %v686 = vadd.f32 %v579, %v580
        %v687 = vrot.slane %v686, 4
        %v688 = vadd.f32 %v686, %v687
        %v689 = vrot.slane %v688, 2
        %v690 = vadd.f32 %v688, %v689
        %v691 = vrot.slane %v690, 1
        %v692 = vadd.f32 %v690, %v691
        %v695 = vrot.slane %v343, 1
        %v696 = vrot.slane %v343, 2
        %v697 = vrot.slane %v343, 3
        %v698 = vrot.slane %v343, 4
        %v699 = vrot.slane %v343, 5
        %v700 = vrot.slane %v343, 6
        %v701 = vrot.slane %v343, 7
        %v702 = vrot.slane %v344, 1
        %v703 = vrot.slane %v344, 2
        %v704 = vrot.slane %v344, 3
        %v705 = vrot.slane %v344, 4
        %v706 = vrot.slane %v344, 5
        %v707 = vrot.slane %v344, 6
        %v708 = vrot.slane %v344, 7
        %v725 = vadd.f32 %v587, %v343
        %v726 = vadd.f32 %v594, %v695
        %v727 = vadd.f32 %v601, %v696
        %v728 = vadd.f32 %v608, %v697
        %v729 = vadd.f32 %v615, %v698
        %v730 = vadd.f32 %v622, %v699
        %v731 = vadd.f32 %v629, %v700
        %v732 = vadd.f32 %v636, %v701
        %v733 = vadd.f32 %v643, %v344
        %v734 = vadd.f32 %v650, %v702
        %v735 = vadd.f32 %v657, %v703
        %v736 = vadd.f32 %v664, %v704
        %v737 = vadd.f32 %v671, %v705
        %v738 = vadd.f32 %v678, %v706
        %v739 = vadd.f32 %v685, %v707
        %v740 = vadd.f32 %v692, %v708
        %v742 = vlaneseq
        %v743 = vshrl.u32 %v742, 7
        %v744 = vsub.s32 0, %v743
        %v745 = vrot.slane %v372, %v744
        %v763 = vrot.slane %v726, 7
        %vm764 = vcmask 1041409
        %v765 = vsel %vm764, %v763, %v725
        %v766 = vrot.slane %v727, 6
        %vm767 = vcmask 1042434
        %v768 = vsel %vm767, %v766, %v765
        %v769 = vrot.slane %v728, 5
        %vm770 = vcmask 1043459
        %v771 = vsel %vm770, %v769, %v768
        %v772 = vrot.slane %v729, 4
        %vm773 = vcmask 1044484
        %v774 = vsel %vm773, %v772, %v771
        %v775 = vrot.slane %v730, 3
        %vm776 = vcmask 1045509
        %v777 = vsel %vm776, %v775, %v774
        %v778 = vrot.slane %v731, 2
        %vm779 = vcmask 1046534
        %v780 = vsel %vm779, %v778, %v777
        %v781 = vrot.slane %v732, 1
        %vm782 = vcmask 1047559
        %v783 = vsel %vm782, %v781, %v780
        %v784 = vrot.slane %v734, 7
        %v785 = vsel %vm764, %v784, %v733
        %v786 = vrot.slane %v735, 6
        %v787 = vsel %vm767, %v786, %v785
        %v788 = vrot.slane %v736, 5
        %v789 = vsel %vm770, %v788, %v787
        %v790 = vrot.slane %v737, 4
        %v791 = vsel %vm773, %v790, %v789
        %v792 = vrot.slane %v738, 3
        %v793 = vsel %vm776, %v792, %v791
        %v794 = vrot.slane %v739, 2
        %v795 = vsel %vm779, %v794, %v793
        %v796 = vrot.slane %v740, 1
        %v797 = vsel %vm782, %v796, %v795
        %800 = vmatprep.subr.mxu0 0.0
        %801 = vmatpush1.msra.mxu0 %v356
        %802 = vmatprep.subr.mxu0 0.0
        %803 = vmatpush1.msra.mxu0 %v357
        %804 = vmatprep.subr.mxu0 0.0
        %805 = vmatpush1.msra.mxu0 %v358
        %806 = vmatprep.subr.mxu0 0.0
        %807 = vmatpush1.msra.mxu0 %v359
        %808 = vmatprep.subr.mxu0 0.0
        %809 = vmatpush1.msra.mxu0 %v360
        %810 = vmatprep.subr.mxu0 0.0
        %811 = vmatpush1.msra.mxu0 %v361
        %812 = vmatprep.subr.mxu0 0.0
        %813 = vmatpush1.msra.mxu0 %v362
        %814 = vmatprep.subr.mxu0 0.0
        %815 = vmatpush1.msra.mxu0 %v363
        %816 = vmatprep.subr.mxu0 0.0
        %817 = vmatpush1.msra.mxu0 %v364
        %818 = vmatprep.subr.mxu0 0.0
        %819 = vmatpush1.msra.mxu0 %v365
        %820 = vmatprep.subr.mxu0 0.0
        %821 = vmatpush1.msra.mxu0 %v366
        %822 = vmatprep.subr.mxu0 0.0
        %823 = vmatpush1.msra.mxu0 %v367
        %824 = vmatprep.subr.mxu0 0.0
        %825 = vmatpush1.msra.mxu0 %v368
        %826 = vmatprep.subr.mxu0 0.0
        %827 = vmatpush1.msra.mxu0 %v369
        %828 = vmatprep.subr.mxu0 0.0
        %829 = vmatpush1.msra.mxu0 %v370
        %830 = vmatprep.subr.mxu0 0.0
        %831 = vmatpush1.msra.mxu0 %v371
        %832 = vmatprep.subr.mxu0 0.0
        %833 = vmatpush1.msra.mxu0 0.0
        %834 = vmatprep.subr.mxu0 0.0
        %835 = vmatpush1.msra.mxu0 0.0
        %836 = vmatprep.subr.mxu0 0.0
        %837 = vmatpush1.msra.mxu0 0.0
        %838 = vmatprep.subr.mxu0 0.0
        %839 = vmatpush1.msra.mxu0 0.0
        %840 = vmatprep.subr.mxu0 0.0
        %841 = vmatpush1.msra.mxu0 0.0
        %842 = vmatprep.subr.mxu0 0.0
        %843 = vmatpush1.msra.mxu0 0.0
        %844 = vmatprep.subr.mxu0 0.0
        %845 = vmatpush1.msra.mxu0 0.0
        %846 = vmatprep.subr.mxu0 0.0
        %847 = vmatpush1.msra.mxu0 0.0
        %848 = vmatprep.subr.mxu0 0.0
        %849 = vmatpush1.msra.mxu0 0.0
        %850 = vmatprep.subr.mxu0 0.0
        %851 = vmatpush1.msra.mxu0 0.0
        %852 = vmatprep.subr.mxu0 0.0
        %853 = vmatpush1.msra.mxu0 0.0
        %854 = vmatprep.subr.mxu0 0.0
        %855 = vmatpush1.msra.mxu0 0.0
        %856 = vmatprep.subr.mxu0 0.0
        %857 = vmatpush1.msra.mxu0 0.0
        %858 = vmatprep.subr.mxu0 0.0
        %859 = vmatpush1.msra.mxu0 0.0
        %860 = vmatprep.subr.mxu0 0.0
        %861 = vmatpush1.msra.mxu0 0.0
        %862 = vmatprep.subr.mxu0 0.0
        %863 = vmatpush1.msra.mxu0 0.0
        %864 = vmatprep.mubr.f32.mxu0 0.0
        %865 = vmatmul.mubr.f32.gmra.mrb[0].mxu0 %v783
        %v866 = vpop.f32.mrb[0].mxu0
        %v867 = vadd.f32 %v745, %v866
        %v868 = vpop.f32.mrb[0].mxu0
        %869 = vmatprep.mubr.f32.mxu0 0.0
        %870 = vmatmul.mubr.f32.gmra.mrb[0].mxu0 %v797
        %v871 = vpop.f32.mrb[0].mxu0
        %v872 = vadd.f32 %v745, %v871
        %v873 = vpop.f32.mrb[0].mxu0
        %874 = vdwg.mxu0
        %v875 = vmul.f32 %v867, %v354
        %v876 = vmul.f32 %v872, %v355
        %v877 = vmax.f32 %v875, 0.0
        %v878 = vmax.f32 %v876, 0.0
        %s879 = scalar_lea.vmem [#allocation7], 128
        %v880 = vld [vmem:[%s879] sm:$0xff]
        %v881 = vld [vmem:[%s879 + $0x8] sm:$0xff]
        %v882 = vld [vmem:[%s879 + $0x10] sm:$0xff]
        %v883 = vld [vmem:[%s879 + $0x18] sm:$0xff]
        %v884 = vld [vmem:[%s879 + $0x20] sm:$0xff]
        %v885 = vld [vmem:[%s879 + $0x28] sm:$0xff]
        %v886 = vld [vmem:[%s879 + $0x30] sm:$0xff]
        %v887 = vld [vmem:[%s879 + $0x38] sm:$0xff]
        %v888 = vld [vmem:[%s879 + $0x40] sm:$0xff]
        %v889 = vld [vmem:[%s879 + $0x48] sm:$0xff]
        %v890 = vld [vmem:[%s879 + $0x50] sm:$0xff]
        %v891 = vld [vmem:[%s879 + $0x58] sm:$0xff]
        %v892 = vld [vmem:[%s879 + $0x60] sm:$0xff]
        %v893 = vld [vmem:[%s879 + $0x68] sm:$0xff]
        %v894 = vld [vmem:[%s879 + $0x70] sm:$0xff]
        %v895 = vld [vmem:[%s879 + $0x78] sm:$0xff]
        %s896 = scalar_lea.vmem %s3, 1
        %v897 = vld [vmem:[%s896] sm:$0x1]
        %v898 = vmul.f32 %v379, %v877
        %v899 = vmul.f32 %v383, %v878
        %v900 = vmul.f32 %v390, %v877
        %v901 = vmul.f32 %v394, %v878
        %v902 = vmul.f32 %v401, %v877
        %v903 = vmul.f32 %v405, %v878
        %v904 = vmul.f32 %v412, %v877
        %v905 = vmul.f32 %v416, %v878
        %v906 = vmul.f32 %v423, %v877
        %v907 = vmul.f32 %v427, %v878
        %v908 = vmul.f32 %v434, %v877
        %v909 = vmul.f32 %v438, %v878
        %v910 = vmul.f32 %v445, %v877
        %v911 = vmul.f32 %v449, %v878
        %v912 = vmul.f32 %v456, %v877
        %v913 = vmul.f32 %v460, %v878
        %v914 = vmul.f32 %v467, %v877
        %v915 = vmul.f32 %v471, %v878
        %v916 = vmul.f32 %v478, %v877
        %v917 = vmul.f32 %v482, %v878
        %v918 = vmul.f32 %v489, %v877
        %v919 = vmul.f32 %v493, %v878
        %v920 = vmul.f32 %v500, %v877
        %v921 = vmul.f32 %v504, %v878
        %v922 = vmul.f32 %v511, %v877
        %v923 = vmul.f32 %v515, %v878
        %v924 = vmul.f32 %v522, %v877
        %v925 = vmul.f32 %v526, %v878
        %v926 = vmul.f32 %v533, %v877
        %v927 = vmul.f32 %v537, %v878
        %v928 = vmul.f32 %v544, %v877
        %v929 = vmul.f32 %v548, %v878
        %v930 = vadd.f32 %v898, %v899
        %v931 = vrot.slane %v930, 4
        %v932 = vadd.f32 %v930, %v931
        %v933 = vrot.slane %v932, 2
        %v934 = vadd.f32 %v932, %v933
        %v935 = vrot.slane %v934, 1
        %v936 = vadd.f32 %v934, %v935
        %v937 = vadd.f32 %v900, %v901
        %v938 = vrot.slane %v937, 4
        %v939 = vadd.f32 %v937, %v938
        %v940 = vrot.slane %v939, 2
        %v941 = vadd.f32 %v939, %v940
        %v942 = vrot.slane %v941, 1
        %v943 = vadd.f32 %v941, %v942
        %v944 = vadd.f32 %v902, %v903
        %v945 = vrot.slane %v944, 4
        %v946 = vadd.f32 %v944, %v945
        %v947 = vrot.slane %v946, 2
        %v948 = vadd.f32 %v946, %v947
        %v949 = vrot.slane %v948, 1
        %v950 = vadd.f32 %v948, %v949
        %v951 = vadd.f32 %v904, %v905
        %v952 = vrot.slane %v951, 4
        %v953 = vadd.f32 %v951, %v952
        %v954 = vrot.slane %v953, 2
        %v955 = vadd.f32 %v953, %v954
        %v956 = vrot.slane %v955, 1
        %v957 = vadd.f32 %v955, %v956
        %v958 = vadd.f32 %v906, %v907
        %v959 = vrot.slane %v958, 4
        %v960 = vadd.f32 %v958, %v959
        %v961 = vrot.slane %v960, 2
        %v962 = vadd.f32 %v960, %v961
        %v963 = vrot.slane %v962, 1
        %v964 = vadd.f32 %v962, %v963
        %v965 = vadd.f32 %v908, %v909
        %v966 = vrot.slane %v965, 4
        %v967 = vadd.f32 %v965, %v966
        %v968 = vrot.slane %v967, 2
        %v969 = vadd.f32 %v967, %v968
        %v970 = vrot.slane %v969, 1
        %v971 = vadd.f32 %v969, %v970
        %v972 = vadd.f32 %v910, %v911
        %v973 = vrot.slane %v972, 4
        %v974 = vadd.f32 %v972, %v973
        %v975 = vrot.slane %v974, 2
        %v976 = vadd.f32 %v974, %v975
        %v977 = vrot.slane %v976, 1
        %v978 = vadd.f32 %v976, %v977
        %v979 = vadd.f32 %v912, %v913
        %v980 = vrot.slane %v979, 4
        %v981 = vadd.f32 %v979, %v980
        %v982 = vrot.slane %v981, 2
        %v983 = vadd.f32 %v981, %v982
        %v984 = vrot.slane %v983, 1
        %v985 = vadd.f32 %v983, %v984
        %v986 = vadd.f32 %v914, %v915
        %v987 = vrot.slane %v986, 4
        %v988 = vadd.f32 %v986, %v987
        %v989 = vrot.slane %v988, 2
        %v990 = vadd.f32 %v988, %v989
        %v991 = vrot.slane %v990, 1
        %v992 = vadd.f32 %v990, %v991
        %v993 = vadd.f32 %v916, %v917
        %v994 = vrot.slane %v993, 4
        %v995 = vadd.f32 %v993, %v994
        %v996 = vrot.slane %v995, 2
        %v997 = vadd.f32 %v995, %v996
        %v998 = vrot.slane %v997, 1
        %v999 = vadd.f32 %v997, %v998
        %v1000 = vadd.f32 %v918, %v919
        %v1001 = vrot.slane %v1000, 4
        %v1002 = vadd.f32 %v1000, %v1001
        %v1003 = vrot.slane %v1002, 2
        %v1004 = vadd.f32 %v1002, %v1003
        %v1005 = vrot.slane %v1004, 1
        %v1006 = vadd.f32 %v1004, %v1005
        %v1007 = vadd.f32 %v920, %v921
        %v1008 = vrot.slane %v1007, 4
        %v1009 = vadd.f32 %v1007, %v1008
        %v1010 = vrot.slane %v1009, 2
        %v1011 = vadd.f32 %v1009, %v1010
        %v1012 = vrot.slane %v1011, 1
        %v1013 = vadd.f32 %v1011, %v1012
        %v1014 = vadd.f32 %v922, %v923
        %v1015 = vrot.slane %v1014, 4
        %v1016 = vadd.f32 %v1014, %v1015
        %v1017 = vrot.slane %v1016, 2
        %v1018 = vadd.f32 %v1016, %v1017
        %v1019 = vrot.slane %v1018, 1
        %v1020 = vadd.f32 %v1018, %v1019
        %v1021 = vadd.f32 %v924, %v925
        %v1022 = vrot.slane %v1021, 4
        %v1023 = vadd.f32 %v1021, %v1022
        %v1024 = vrot.slane %v1023, 2
        %v1025 = vadd.f32 %v1023, %v1024
        %v1026 = vrot.slane %v1025, 1
        %v1027 = vadd.f32 %v1025, %v1026
        %v1028 = vadd.f32 %v926, %v927
        %v1029 = vrot.slane %v1028, 4
        %v1030 = vadd.f32 %v1028, %v1029
        %v1031 = vrot.slane %v1030, 2
        %v1032 = vadd.f32 %v1030, %v1031
        %v1033 = vrot.slane %v1032, 1
        %v1034 = vadd.f32 %v1032, %v1033
        %v1035 = vadd.f32 %v928, %v929
        %v1036 = vrot.slane %v1035, 4
        %v1037 = vadd.f32 %v1035, %v1036
        %v1038 = vrot.slane %v1037, 2
        %v1039 = vadd.f32 %v1037, %v1038
        %v1040 = vrot.slane %v1039, 1
        %v1041 = vadd.f32 %v1039, %v1040
        %v1044 = vrot.slane %v877, 1
        %v1045 = vrot.slane %v877, 2
        %v1046 = vrot.slane %v877, 3
        %v1047 = vrot.slane %v877, 4
        %v1048 = vrot.slane %v877, 5
        %v1049 = vrot.slane %v877, 6
        %v1050 = vrot.slane %v877, 7
        %v1051 = vrot.slane %v878, 1
        %v1052 = vrot.slane %v878, 2
        %v1053 = vrot.slane %v878, 3
        %v1054 = vrot.slane %v878, 4
        %v1055 = vrot.slane %v878, 5
        %v1056 = vrot.slane %v878, 6
        %v1057 = vrot.slane %v878, 7
        %v1074 = vadd.f32 %v936, %v877
        %v1075 = vadd.f32 %v943, %v1044
        %v1076 = vadd.f32 %v950, %v1045
        %v1077 = vadd.f32 %v957, %v1046
        %v1078 = vadd.f32 %v964, %v1047
        %v1079 = vadd.f32 %v971, %v1048
        %v1080 = vadd.f32 %v978, %v1049
        %v1081 = vadd.f32 %v985, %v1050
        %v1082 = vadd.f32 %v992, %v878
        %v1083 = vadd.f32 %v999, %v1051
        %v1084 = vadd.f32 %v1006, %v1052
        %v1085 = vadd.f32 %v1013, %v1053
        %v1086 = vadd.f32 %v1020, %v1054
        %v1087 = vadd.f32 %v1027, %v1055
        %v1088 = vadd.f32 %v1034, %v1056
        %v1089 = vadd.f32 %v1041, %v1057
        %v1091 = vlaneseq
        %v1092 = vshrl.u32 %v1091, 7
        %v1093 = vsub.s32 0, %v1092
        %v1094 = vrot.slane %v897, %v1093
        %v1112 = vrot.slane %v1075, 7
        %v1113 = vsel %vm764, %v1112, %v1074
        %v1114 = vrot.slane %v1076, 6
        %v1115 = vsel %vm767, %v1114, %v1113
        %v1116 = vrot.slane %v1077, 5
        %v1117 = vsel %vm770, %v1116, %v1115
        %v1118 = vrot.slane %v1078, 4
        %v1119 = vsel %vm773, %v1118, %v1117
        %v1120 = vrot.slane %v1079, 3
        %v1121 = vsel %vm776, %v1120, %v1119
        %v1122 = vrot.slane %v1080, 2
        %v1123 = vsel %vm779, %v1122, %v1121
        %v1124 = vrot.slane %v1081, 1
        %v1125 = vsel %vm782, %v1124, %v1123
        %v1126 = vrot.slane %v1083, 7
        %v1127 = vsel %vm764, %v1126, %v1082
        %v1128 = vrot.slane %v1084, 6
        %v1129 = vsel %vm767, %v1128, %v1127
        %v1130 = vrot.slane %v1085, 5
        %v1131 = vsel %vm770, %v1130, %v1129
        %v1132 = vrot.slane %v1086, 4
        %v1133 = vsel %vm773, %v1132, %v1131
        %v1134 = vrot.slane %v1087, 3
        %v1135 = vsel %vm776, %v1134, %v1133
        %v1136 = vrot.slane %v1088, 2
        %v1137 = vsel %vm779, %v1136, %v1135
        %v1138 = vrot.slane %v1089, 1
        %v1139 = vsel %vm782, %v1138, %v1137
        %1142 = vmatprep.subr.mxu0 0.0
        %1143 = vmatpush1.msra.mxu0 %v880
        %1144 = vmatprep.subr.mxu0 0.0
        %1145 = vmatpush1.msra.mxu0 %v881
        %1146 = vmatprep.subr.mxu0 0.0
        %1147 = vmatpush1.msra.mxu0 %v882
        %1148 = vmatprep.subr.mxu0 0.0
        %1149 = vmatpush1.msra.mxu0 %v883
        %1150 = vmatprep.subr.mxu0 0.0
        %1151 = vmatpush1.msra.mxu0 %v884
        %1152 = vmatprep.subr.mxu0 0.0
        %1153 = vmatpush1.msra.mxu0 %v885
        %1154 = vmatprep.subr.mxu0 0.0
        %1155 = vmatpush1.msra.mxu0 %v886
        %1156 = vmatprep.subr.mxu0 0.0
        %1157 = vmatpush1.msra.mxu0 %v887
        %1158 = vmatprep.subr.mxu0 0.0
        %1159 = vmatpush1.msra.mxu0 %v888
        %1160 = vmatprep.subr.mxu0 0.0
        %1161 = vmatpush1.msra.mxu0 %v889
        %1162 = vmatprep.subr.mxu0 0.0
        %1163 = vmatpush1.msra.mxu0 %v890
        %1164 = vmatprep.subr.mxu0 0.0
        %1165 = vmatpush1.msra.mxu0 %v891
        %1166 = vmatprep.subr.mxu0 0.0
        %1167 = vmatpush1.msra.mxu0 %v892
        %1168 = vmatprep.subr.mxu0 0.0
        %1169 = vmatpush1.msra.mxu0 %v893
        %1170 = vmatprep.subr.mxu0 0.0
        %1171 = vmatpush1.msra.mxu0 %v894
        %1172 = vmatprep.subr.mxu0 0.0
        %1173 = vmatpush1.msra.mxu0 %v895
        %1174 = vmatprep.subr.mxu0 0.0
        %1175 = vmatpush1.msra.mxu0 0.0
        %1176 = vmatprep.subr.mxu0 0.0
        %1177 = vmatpush1.msra.mxu0 0.0
        %1178 = vmatprep.subr.mxu0 0.0
        %1179 = vmatpush1.msra.mxu0 0.0
        %1180 = vmatprep.subr.mxu0 0.0
        %1181 = vmatpush1.msra.mxu0 0.0
        %1182 = vmatprep.subr.mxu0 0.0
        %1183 = vmatpush1.msra.mxu0 0.0
        %1184 = vmatprep.subr.mxu0 0.0
        %1185 = vmatpush1.msra.mxu0 0.0
        %1186 = vmatprep.subr.mxu0 0.0
        %1187 = vmatpush1.msra.mxu0 0.0
        %1188 = vmatprep.subr.mxu0 0.0
        %1189 = vmatpush1.msra.mxu0 0.0
        %1190 = vmatprep.subr.mxu0 0.0
        %1191 = vmatpush1.msra.mxu0 0.0
        %1192 = vmatprep.subr.mxu0 0.0
        %1193 = vmatpush1.msra.mxu0 0.0
        %1194 = vmatprep.subr.mxu0 0.0
        %1195 = vmatpush1.msra.mxu0 0.0
        %1196 = vmatprep.subr.mxu0 0.0
        %1197 = vmatpush1.msra.mxu0 0.0
        %1198 = vmatprep.subr.mxu0 0.0
        %1199 = vmatpush1.msra.mxu0 0.0
        %1200 = vmatprep.subr.mxu0 0.0
        %1201 = vmatpush1.msra.mxu0 0.0
        %1202 = vmatprep.subr.mxu0 0.0
        %1203 = vmatpush1.msra.mxu0 0.0
        %1204 = vmatprep.subr.mxu0 0.0
        %1205 = vmatpush1.msra.mxu0 0.0
        %1206 = vmatprep.mubr.f32.mxu0 0.0
        %1207 = vmatmul.mubr.f32.gmra.mrb[0].mxu0 %v1125
        %v1208 = vpop.f32.mrb[0].mxu0
        %v1209 = vadd.f32 %v1094, %v1208
        %v1210 = vpop.f32.mrb[0].mxu0
        %1211 = vmatprep.mubr.f32.mxu0 0.0
        %1212 = vmatmul.mubr.f32.gmra.mrb[0].mxu0 %v1139
        %v1213 = vpop.f32.mrb[0].mxu0
        %v1214 = vadd.f32 %v1094, %v1213
        %v1215 = vpop.f32.mrb[0].mxu0
        %1216 = vdwg.mxu0
        %v1217 = vmul.f32 %v1209, %v354
        %v1218 = vmul.f32 %v1214, %v355
        %v1219 = vmax.f32 %v1217, 0.0
        %v1220 = vmax.f32 %v1218, 0.0
        %v1221 = vadd.f32 %v1219, %v343
        %v1222 = vadd.f32 %v1220, %v344
        %v1223 = vld [vmem:[#allocation8] sm:$0xff]
        %v1224 = vld [vmem:[#allocation8 + $0x8] sm:$0xff]
        %v1225 = vld [vmem:[#allocation8 + $0x10] sm:$0xff]
        %v1226 = vld [vmem:[#allocation8 + $0x18] sm:$0xff]
        %v1227 = vld [vmem:[#allocation8 + $0x20] sm:$0xff]
        %v1228 = vld [vmem:[#allocation8 + $0x28] sm:$0xff]
        %v1229 = vld [vmem:[#allocation8 + $0x30] sm:$0xff]
        %v1230 = vld [vmem:[#allocation8 + $0x38] sm:$0xff]
        %v1231 = vld [vmem:[#allocation8 + $0x40] sm:$0xff]
        %v1232 = vld [vmem:[#allocation8 + $0x48] sm:$0xff]
        %v1233 = vld [vmem:[#allocation8 + $0x50] sm:$0xff]
        %v1234 = vld [vmem:[#allocation8 + $0x58] sm:$0xff]
        %v1235 = vld [vmem:[#allocation8 + $0x60] sm:$0xff]
        %v1236 = vld [vmem:[#allocation8 + $0x68] sm:$0xff]
        %v1237 = vld [vmem:[#allocation8 + $0x70] sm:$0xff]
        %v1238 = vld [vmem:[#allocation8 + $0x78] sm:$0xff]
        %v1239 = vld [vmem:[%s5] sm:$0x1]
        %v1241 = vlaneseq
        %v1242 = vshrl.u32 %v1241, 7
        %v1243 = vsub.s32 0, %v1242
        %v1244 = vrot.slane %v1239, %v1243
        %1246 = vmatprep.subr.mxu0 0.0
        %1247 = vmatpush1.msra.mxu0 %v1223
        %1248 = vmatprep.subr.mxu0 0.0
        %1249 = vmatpush1.msra.mxu0 %v1224
        %1250 = vmatprep.subr.mxu0 0.0
        %1251 = vmatpush1.msra.mxu0 %v1225
        %1252 = vmatprep.subr.mxu0 0.0
        %1253 = vmatpush1.msra.mxu0 %v1226
        %1254 = vmatprep.subr.mxu0 0.0
        %1255 = vmatpush1.msra.mxu0 %v1227
        %1256 = vmatprep.subr.mxu0 0.0
        %1257 = vmatpush1.msra.mxu0 %v1228
        %1258 = vmatprep.subr.mxu0 0.0
        %1259 = vmatpush1.msra.mxu0 %v1229
        %1260 = vmatprep.subr.mxu0 0.0
        %1261 = vmatpush1.msra.mxu0 %v1230
        %1262 = vmatprep.subr.mxu0 0.0
        %1263 = vmatpush1.msra.mxu0 %v1231
        %1264 = vmatprep.subr.mxu0 0.0
        %1265 = vmatpush1.msra.mxu0 %v1232
        %1266 = vmatprep.subr.mxu0 0.0
        %1267 = vmatpush1.msra.mxu0 %v1233
        %1268 = vmatprep.subr.mxu0 0.0
        %1269 = vmatpush1.msra.mxu0 %v1234
        %1270 = vmatprep.subr.mxu0 0.0
        %1271 = vmatpush1.msra.mxu0 %v1235
        %1272 = vmatprep.subr.mxu0 0.0
        %1273 = vmatpush1.msra.mxu0 %v1236
        %1274 = vmatprep.subr.mxu0 0.0
        %1275 = vmatpush1.msra.mxu0 %v1237
        %1276 = vmatprep.subr.mxu0 0.0
        %1277 = vmatpush1.msra.mxu0 %v1238
        %1278 = vmatprep.subr.mxu0 0.0
        %1279 = vmatpush1.msra.mxu0 0.0
        %1280 = vmatprep.subr.mxu0 0.0
        %1281 = vmatpush1.msra.mxu0 0.0
        %1282 = vmatprep.subr.mxu0 0.0
        %1283 = vmatpush1.msra.mxu0 0.0
        %1284 = vmatprep.subr.mxu0 0.0
        %1285 = vmatpush1.msra.mxu0 0.0
        %1286 = vmatprep.subr.mxu0 0.0
        %1287 = vmatpush1.msra.mxu0 0.0
        %1288 = vmatprep.subr.mxu0 0.0
        %1289 = vmatpush1.msra.mxu0 0.0
        %1290 = vmatprep.subr.mxu0 0.0
        %1291 = vmatpush1.msra.mxu0 0.0
        %1292 = vmatprep.subr.mxu0 0.0
        %1293 = vmatpush1.msra.mxu0 0.0
        %1294 = vmatprep.subr.mxu0 0.0
        %1295 = vmatpush1.msra.mxu0 0.0
        %1296 = vmatprep.subr.mxu0 0.0
        %1297 = vmatpush1.msra.mxu0 0.0
        %1298 = vmatprep.subr.mxu0 0.0
        %1299 = vmatpush1.msra.mxu0 0.0
        %1300 = vmatprep.subr.mxu0 0.0
        %1301 = vmatpush1.msra.mxu0 0.0
        %1302 = vmatprep.subr.mxu0 0.0
        %1303 = vmatpush1.msra.mxu0 0.0
        %1304 = vmatprep.subr.mxu0 0.0
        %1305 = vmatpush1.msra.mxu0 0.0
        %1306 = vmatprep.subr.mxu0 0.0
        %1307 = vmatpush1.msra.mxu0 0.0
        %1308 = vmatprep.subr.mxu0 0.0
        %1309 = vmatpush1.msra.mxu0 0.0
        %1310 = vmatprep.mubr.f32.mxu0 0.0
        %1311 = vmatmul.mubr.f32.gmra.mrb[0].mxu0 %v1221
        %v1312 = vpop.f32.mrb[0].mxu0
        %v1313 = vadd.f32 %v1244, %v1312
        %v1314 = vpop.f32.mrb[0].mxu0
        %1315 = vmatprep.mubr.f32.mxu0 0.0
        %1316 = vmatmul.mubr.f32.gmra.mrb[0].mxu0 %v1222
        %v1317 = vpop.f32.mrb[0].mxu0
        %v1318 = vadd.f32 %v1244, %v1317
        %v1319 = vpop.f32.mrb[0].mxu0
        %1320 = vdwg.mxu0
        %1321 = vst [vmem:[%s338] sm:$0xff] %v1313
        %1322 = vst [vmem:[%s338 + $0x8] sm:$0xff] %v1318
        %s1323 = sand.u32 %s171, 1
        %s1324 = scalar_lea.sflag [#allocation4], %s1323
        %s1325 = sand.u32 %s171, 1
        %s1326 = smul.addr %s1325, 16
        %s1327 = scalar_lea.vmem [#allocation10], %s1326
        // Predicated region
        $region61: #{tpu_custom_call.1} parent=43 // pred_check
          %p1328 = pneg %p181
        $region62: #{tpu_custom_call.1} parent=43 // pred_check_branch
          %1330 = sbr.rel (%p1328) target = $region64
        $region63: #{tpu_custom_call.1} parent=43 // pred_region
          %s1332 = ssub.s32 256, 256
          %1333 = vsyncadd %s1324, %s1332
          %s1334 = smul.addr %s27, 2
          %s1335 = smul.addr %s1334, 128
          %s1336 = scalar_lea.hbm %s6, %s1335
          %s1337 = sshll.u32 %s1327, 4
          %s1338 = int_to_ptr.vmem [resolvable:$true] %s1337
          %1343 = dma.vmem_to_hbm [thread:$0]  %s1338, 256, %s1336, %s1324, 128, 128, 8
        $region64: #{tpu_custom_call.1} parent=43 // pred_fallthru
          _
      $region44: #{tpu_custom_call.1} parent=5 // pred_fallthru
        _
      %p1344 = scmp.le.s32.totalorder 2, %s22
      // Predicated region
      $region65: #{tpu_custom_call.1} parent=5 // pred_check
        %p1345 = pneg %p1344
      $region66: #{tpu_custom_call.1} parent=5 // pred_check_branch
        %1347 = sbr.rel (%p1345) target = $region68
      $region67: #{tpu_custom_call.1} parent=5 // pred_region
        %s1348 = ssub.s32 %s22, 2
        // Predicated region
        $region69: #{tpu_custom_call.1} parent=67 // pred_check
          %p1349 = pneg %p187
        $region70: #{tpu_custom_call.1} parent=67 // pred_check_branch
          %1351 = sbr.rel (%p1349) target = $region72
        $region71: #{tpu_custom_call.1} parent=67 // pred_region
          %s1352 = sand.u32 %s172, 1
          %s1353 = scalar_lea.sflag [#allocation4], %s1352
          %s1354 = sand.u32 %s172, 1
          %s1355 = smul.addr %s1354, 16
          %s1356 = scalar_lea.vmem [#allocation10], %s1355
          %1357 = dma.done %s1353, 256
        $region72: #{tpu_custom_call.1} parent=67 // pred_fallthru
          _
      $region68: #{tpu_custom_call.1} parent=5 // pred_fallthru
        _
    $region6: #{tpu_custom_call.1} parent=1 // loop_footer
      %s26 = sadd.s32 1, %s22
    $region7: #{tpu_custom_call.1} parent=1 // loop_footer_branch
      %21 = sbr.rel target = $region3
    $region8: #{tpu_custom_call.1} parent=1 // loop_exit
      _
    %1358 = vsyncpa [#allocation3], 1
    %s1359 = scalar_lea.sflag [#allocation3], 1
    %1360 = vsyncpa %s1359, 1
    %1361 = vsyncpa [#allocation6], 1
    %s1362 = scalar_lea.sflag [#allocation6], 1
    %1363 = vsyncpa %s1362, 1
    %1364 = vsyncpa [#allocation9], 1
    %1365 = vsyncpa [#allocation4], 1
    %s1366 = scalar_lea.sflag [#allocation4], 1
    %1367 = vsyncpa %s1366, 1

</llo_original>
